<compile_context>
chip_gen: v7x
topology: tpu7x:2x2x1
jax: 0.10.0
libtpu: 0.0.40
codegen_flags: <defaults>
</compile_context>

<pallas_src>
import functools

import jax
import jax.numpy as jnp
from jax import lax
from jax.experimental import pallas as pl
from jax.experimental.pallas import tpu as pltpu

COUT = 2
BN_EPS = 1e-5
# Conv2d(1, 2, kernel_size=2) weights, flattened per output channel as
# (w[0,0], w[0,1], w[1,0], w[1,1]).  Conv bias (0.1, 1.0) intentionally omitted
# in the kernels (cancels under training-mode BN; see header).
CONV_W = ((0.1, -2.0, 1.0, 0.1),
          (0.1, 2.0, -1.0, 0.1))
CONV_B = (0.1, 1.0)   # only used by the pure-JAX reference
BN_GAMMA = (0.2, 2.0)
BN_BETA = (0.1, 1.0)


def _pick_row_chunk(oh):
    """Largest of {32,16,8} dividing OH, else the whole OH (tiny images)."""
    for ch in (32, 16, 8):
        if oh % ch == 0:
            return ch
    return oh


def _pick_tile_n(n, h, w, oh, ow):
    """Largest divisor of N with double-buffered working set < ~12 MiB and,
    when N >= 2, at least 2 grid steps (v7x megacore sharding)."""
    per_img = 4 * (h * w + COUT * oh * ow)         # f32 in-tile + out-tile bytes
    budget = 12 * 1024 * 1024
    best = 1
    for t in range(1, n + 1):
        if n % t:
            continue
        if 2 * t * per_img > budget:
            continue
        if n >= 2 and n // t < 2:
            continue
        best = t
    return best


def _conv_taps(x_ref, r0, ch, ow):
    """Load CH+1 aligned rows once; return the four shifted 2x2-window taps."""
    xa = x_ref[:, pl.ds(r0, ch + 1), :]            # (TILE_N, CH+1, W)
    x00 = xa[:, 0:ch, 0:ow]
    x01 = xa[:, 0:ch, 1:ow + 1]
    x10 = xa[:, 1:ch + 1, 0:ow]
    x11 = xa[:, 1:ch + 1, 1:ow + 1]
    return x00, x01, x10, x11


def stats_kernel(x_ref, stats_ref, *, ch, n_chunks, ow, unroll):
    """Per-column partial BN stats of the bias-less conv output.

    x_ref:     (TILE_N, H, W)
    stats_ref: (1, 2*COUT, OW) rows = [sum_c0, sumsq_c0, sum_c1, sumsq_c1],
               summed over this tile's images and output rows.
    """
    stats_ref[...] = jnp.zeros_like(stats_ref)

    def body(j, carry):
        r0 = j * ch
        if ch % 8 == 0:
            r0 = pl.multiple_of(r0, ch)
        x00, x01, x10, x11 = _conv_taps(x_ref, r0, ch, ow)
        for c in range(COUT):
            w00, w01, w10, w11 = CONV_W[c]
            y = w00 * x00 + w01 * x01 + w10 * x10 + w11 * x11     # (TILE_N, CH, OW)
            stats_ref[:, 2 * c:2 * c + 1, :] += jnp.sum(
                y, axis=(0, 1), keepdims=True)
            stats_ref[:, 2 * c + 1:2 * c + 2, :] += jnp.sum(
                y * y, axis=(0, 1), keepdims=True)
        return carry

    lax.fori_loop(0, n_chunks, body, 0, unroll=unroll)


def conv_bn_kernel(scale_ref, shift_ref, x_ref, out_ref, *, ch, n_chunks, ow, unroll):
    """Fused recompute of the 2x2 conv + folded BN affine: out = conv(x)*scale + shift."""
    scales = [scale_ref[c] for c in range(COUT)]   # hoisted SMEM scalar reads
    shifts = [shift_ref[c] for c in range(COUT)]

    def body(j, carry):
        r0 = j * ch
        if ch % 8 == 0:
            r0 = pl.multiple_of(r0, ch)
        x00, x01, x10, x11 = _conv_taps(x_ref, r0, ch, ow)
        for c in range(COUT):
            w00, w01, w10, w11 = CONV_W[c]
            y = w00 * x00 + w01 * x01 + w10 * x10 + w11 * x11     # (TILE_N, CH, OW)
            out_ref[:, c:c + 1, pl.ds(r0, ch), :] = (
                y * scales[c] + shifts[c])[:, None]
        return carry

    lax.fori_loop(0, n_chunks, body, 0, unroll=unroll)


@jax.jit
def custom_conv_bn_forward(x):
    """x: (N, 1, H, W) float32 NCHW (PyTorch layout). Returns (N, 2, H-1, W-1)."""
    x = x.astype(jnp.float32)
    N, cin, H, W = x.shape
    assert cin == 1, "module's conv has in_channels=1"
    OH, OW = H - 1, W - 1

    xr = x[:, 0]                                   # (N, H, W); size-1 squeeze is free

    TILE_N = _pick_tile_n(N, H, W, OH, OW)         # divides N exactly
    n_tiles = N // TILE_N
    CH = _pick_row_chunk(OH)
    NCH = OH // CH
    UNROLL = NCH <= 8

    cparams = pltpu.CompilerParams(dimension_semantics=("parallel",))
    x_spec = pl.BlockSpec((TILE_N, H, W), lambda i: (i, 0, 0))

    # ---- pass 1: per-tile partial BN statistics (nothing but stats hits HBM) ----
    stats = pl.pallas_call(
        functools.partial(stats_kernel, ch=CH, n_chunks=NCH, ow=OW, unroll=UNROLL),
        out_shape=jax.ShapeDtypeStruct((n_tiles, 2 * COUT, OW), jnp.float32),
        grid=(n_tiles,),
        in_specs=[x_spec],
        out_specs=pl.BlockSpec((1, 2 * COUT, OW), lambda i: (i, 0, 0)),
        compiler_params=cparams,
    )(xr)

    # ---- finalize BN batch stats, fold into one per-channel affine (tiny, XLA) ----
    s = stats.reshape(n_tiles, COUT, 2, OW).sum(axis=(0, 3))     # (COUT, 2)
    cnt = float(N * OH * OW)
    mean = s[:, 0] / cnt
    var = jnp.maximum(s[:, 1] / cnt - mean * mean, 0.0)          # clamp 1-pass variance
    inv_std = lax.rsqrt(var + BN_EPS)
    scale = jnp.asarray(BN_GAMMA, jnp.float32) * inv_std         # (COUT,)
    shift = jnp.asarray(BN_BETA, jnp.float32) - mean * scale     # conv bias cancels exactly

    # ---- pass 2: fused conv recompute + BN affine ----
    smem_spec = pl.BlockSpec((COUT,), lambda i: (0,),
                             memory_space=pltpu.MemorySpace.SMEM)
    out = pl.pallas_call(
        functools.partial(conv_bn_kernel, ch=CH, n_chunks=NCH, ow=OW, unroll=UNROLL),
        out_shape=jax.ShapeDtypeStruct((N, COUT, OH, OW), jnp.float32),
        grid=(n_tiles,),
        in_specs=[smem_spec, smem_spec, x_spec],
        out_specs=pl.BlockSpec((TILE_N, COUT, OH, OW), lambda i: (i, 0, 0, 0)),
        compiler_params=cparams,
    )(scale, shift, xr)
    return out


def _reference(x):
    """Pure-JAX reference (conv + bias + training-mode BN) for sanity checking."""
    x = x.astype(jnp.float32)
    w = jnp.array([[[[0.1, -2.0], [1.0, 0.1]]],
                   [[[0.1, 2.0], [-1.0, 0.1]]]], jnp.float32)
    b = jnp.asarray(CONV_B, jnp.float32)
    y = jax.lax.conv_general_dilated(
        x, w, window_strides=(1, 1), padding="VALID",
        dimension_numbers=("NCHW", "OIHW", "NCHW")) + b.reshape(1, -1, 1, 1)
    mean = jnp.mean(y, axis=(0, 2, 3), keepdims=True)
    var = jnp.mean((y - mean) ** 2, axis=(0, 2, 3), keepdims=True)
    y_hat = (y - mean) * jax.lax.rsqrt(var + BN_EPS)
    gamma = jnp.asarray(BN_GAMMA, jnp.float32).reshape(1, -1, 1, 1)
    beta = jnp.asarray(BN_BETA, jnp.float32).reshape(1, -1, 1, 1)
    return y_hat * gamma + beta


def _check(x):
    out = jax.block_until_ready(custom_conv_bn_forward(x))
    ref = _reference(x)
    assert out.shape == ref.shape, (out.shape, ref.shape)
    err = float(jnp.max(jnp.abs(out - ref)))
    assert jnp.allclose(out, ref, atol=1e-4, rtol=1e-4), err


if __name__ == "__main__":
    key = jax.random.PRNGKey(0)
    k0, k1, k2 = jax.random.split(key, 3)

    # Lane-dense demo: W=H=129 -> OW=128 (fully unmasked 128-lane stores),
    # N=2 -> n_tiles=2 (megacore-shardable on v7x).
    _check(jax.random.normal(k0, (2, 1, 129, 129), jnp.float32))

    # The module's own INPUT_SIZE = [1, 1, 4, 4] (tiny / fallback chunk path).
    _check(jax.random.normal(k1, (1, 1, 4, 4), jnp.float32))

    # Exercises TILE_N > 1 (2 images per grid step) and non-lane-aligned OW.
    _check(jax.random.normal(k2, (4, 1, 33, 33), jnp.float32))

    # TODO(synk): BatchNorm running_mean/running_var buffer updates (training-mode
    # side effect) are not modeled; forward output does not depend on them.
    print("KERNEL_OK")
</pallas_src>

<mosaic_0001>
module attributes {stable_mosaic.version = 11 : i64} {
  func.func @stats_kernel(%arg0: i32, %arg1: memref<1x129x129xf32, #tpu.memory_space<vmem>>, %arg2: memref<1x4x128xf32, #tpu.memory_space<vmem>>) attributes {dimension_semantics = [#tpu.dimension_semantics<parallel>], iteration_bounds = array<i64: 2>, scalar_prefetch = 0 : i64, scratch_operands = 0 : i64, tpu.core_type = #tpu.core_type<tc>, window_params = [{transform_indices = @transform_0, window_bounds = array<i64: 1, 129, 129>}, {transform_indices = @transform_1, window_bounds = array<i64: 1, 4, 128>}]} {
    %cst = arith.constant 0.000000e+00 : f32
    %0 = vector.broadcast %cst : f32 to vector<1x4x128xf32>
    %c0 = arith.constant 0 : index
    %c0_0 = arith.constant 0 : index
    %c0_1 = arith.constant 0 : index
    %1 = vector.load %arg2[%c0, %c0_0, %c0_1] : memref<1x4x128xf32, #tpu.memory_space<vmem>>, vector<1x4x128xf32>
    tpu.vector_store %arg2[%c0, %c0_0, %c0_1], %0 {strides = array<i32>} : memref<1x4x128xf32, #tpu.memory_space<vmem>>, vector<1x4x128xf32>,
    %c0_i32 = arith.constant 0 : i32
    %c32_i32 = arith.constant 32 : i32
    %2 = arith.muli %c0_i32, %c32_i32 : i32
    %3 = tpu.assume_multiple %2, 32 : i32
    %c0_2 = arith.constant 0 : index
    %4 = arith.index_cast %3 : i32 to index
    %c0_3 = arith.constant 0 : index
    %5 = vector.load %arg1[%c0_2, %4, %c0_3] : memref<1x129x129xf32, #tpu.memory_space<vmem>>, vector<1x33x129xf32>
    %6 = vector.extract_strided_slice %5 {offsets = [0, 0, 0], sizes = [1, 32, 128], strides = [1, 1, 1]} : vector<1x33x129xf32> to vector<1x32x128xf32>
    %7 = vector.extract_strided_slice %5 {offsets = [0, 0, 1], sizes = [1, 32, 128], strides = [1, 1, 1]} : vector<1x33x129xf32> to vector<1x32x128xf32>
    %8 = vector.extract_strided_slice %5 {offsets = [0, 1, 0], sizes = [1, 32, 128], strides = [1, 1, 1]} : vector<1x33x129xf32> to vector<1x32x128xf32>
    %9 = vector.extract_strided_slice %5 {offsets = [0, 1, 1], sizes = [1, 32, 128], strides = [1, 1, 1]} : vector<1x33x129xf32> to vector<1x32x128xf32>
    %cst_4 = arith.constant 1.000000e-01 : f32
    %10 = vector.broadcast %cst_4 : f32 to vector<1x32x128xf32>
    %11 = arith.mulf %10, %6 : vector<1x32x128xf32>
    %cst_5 = arith.constant -2.000000e+00 : f32
    %12 = vector.broadcast %cst_5 : f32 to vector<1x32x128xf32>
    %13 = arith.mulf %12, %7 : vector<1x32x128xf32>
    %14 = arith.addf %11, %13 : vector<1x32x128xf32>
    %cst_6 = arith.constant 1.000000e+00 : f32
    %15 = vector.broadcast %cst_6 : f32 to vector<1x32x128xf32>
    %16 = arith.mulf %15, %8 : vector<1x32x128xf32>
    %17 = arith.addf %14, %16 : vector<1x32x128xf32>
    %cst_7 = arith.constant 1.000000e-01 : f32
    %18 = vector.broadcast %cst_7 : f32 to vector<1x32x128xf32>
    %19 = arith.mulf %18, %9 : vector<1x32x128xf32>
    %20 = arith.addf %17, %19 : vector<1x32x128xf32>
    %c0_8 = arith.constant 0 : index
    %c0_9 = arith.constant 0 : index
    %c0_10 = arith.constant 0 : index
    %21 = vector.load %arg2[%c0_8, %c0_9, %c0_10] : memref<1x4x128xf32, #tpu.memory_space<vmem>>, vector<1x1x128xf32>
    %cst_11 = arith.constant dense<0.000000e+00> : vector<128xf32>
    %22 = vector.multi_reduction <add>, %20, %cst_11 [0, 1] : vector<1x32x128xf32> to vector<128xf32>
    %23 = vector.shape_cast %22 : vector<128xf32> to vector<1x1x128xf32>
    %24 = arith.addf %21, %23 : vector<1x1x128xf32>
    %c0_12 = arith.constant 0 : index
    %c0_13 = arith.constant 0 : index
    %c0_14 = arith.constant 0 : index
    %25 = vector.load %arg2[%c0_12, %c0_13, %c0_14] : memref<1x4x128xf32, #tpu.memory_space<vmem>>, vector<1x1x128xf32>
    tpu.vector_store %arg2[%c0_12, %c0_13, %c0_14], %24 {strides = array<i32>} : memref<1x4x128xf32, #tpu.memory_space<vmem>>, vector<1x1x128xf32>,
    %c0_15 = arith.constant 0 : index
    %c1 = arith.constant 1 : index
    %c0_16 = arith.constant 0 : index
    %26 = vector.load %arg2[%c0_15, %c1, %c0_16] : memref<1x4x128xf32, #tpu.memory_space<vmem>>, vector<1x1x128xf32>
    %27 = arith.mulf %20, %20 : vector<1x32x128xf32>
    %cst_17 = arith.constant dense<0.000000e+00> : vector<128xf32>
    %28 = vector.multi_reduction <add>, %27, %cst_17 [0, 1] : vector<1x32x128xf32> to vector<128xf32>
    %29 = vector.shape_cast %28 : vector<128xf32> to vector<1x1x128xf32>
    %30 = arith.addf %26, %29 : vector<1x1x128xf32>
    %c0_18 = arith.constant 0 : index
    %c1_19 = arith.constant 1 : index
    %c0_20 = arith.constant 0 : index
    %31 = vector.load %arg2[%c0_18, %c1_19, %c0_20] : memref<1x4x128xf32, #tpu.memory_space<vmem>>, vector<1x1x128xf32>
    tpu.vector_store %arg2[%c0_18, %c1_19, %c0_20], %30 {strides = array<i32>} : memref<1x4x128xf32, #tpu.memory_space<vmem>>, vector<1x1x128xf32>,
    %cst_21 = arith.constant 1.000000e-01 : f32
    %32 = vector.broadcast %cst_21 : f32 to vector<1x32x128xf32>
    %33 = arith.mulf %32, %6 : vector<1x32x128xf32>
    %cst_22 = arith.constant 2.000000e+00 : f32
    %34 = vector.broadcast %cst_22 : f32 to vector<1x32x128xf32>
    %35 = arith.mulf %34, %7 : vector<1x32x128xf32>
    %36 = arith.addf %33, %35 : vector<1x32x128xf32>
    %cst_23 = arith.constant -1.000000e+00 : f32
    %37 = vector.broadcast %cst_23 : f32 to vector<1x32x128xf32>
    %38 = arith.mulf %37, %8 : vector<1x32x128xf32>
    %39 = arith.addf %36, %38 : vector<1x32x128xf32>
    %cst_24 = arith.constant 1.000000e-01 : f32
    %40 = vector.broadcast %cst_24 : f32 to vector<1x32x128xf32>
    %41 = arith.mulf %40, %9 : vector<1x32x128xf32>
    %42 = arith.addf %39, %41 : vector<1x32x128xf32>
    %c0_25 = arith.constant 0 : index
    %c2 = arith.constant 2 : index
    %c0_26 = arith.constant 0 : index
    %43 = vector.load %arg2[%c0_25, %c2, %c0_26] : memref<1x4x128xf32, #tpu.memory_space<vmem>>, vector<1x1x128xf32>
    %cst_27 = arith.constant dense<0.000000e+00> : vector<128xf32>
    %44 = vector.multi_reduction <add>, %42, %cst_27 [0, 1] : vector<1x32x128xf32> to vector<128xf32>
    %45 = vector.shape_cast %44 : vector<128xf32> to vector<1x1x128xf32>
    %46 = arith.addf %43, %45 : vector<1x1x128xf32>
    %c0_28 = arith.constant 0 : index
    %c2_29 = arith.constant 2 : index
    %c0_30 = arith.constant 0 : index
    %47 = vector.load %arg2[%c0_28, %c2_29, %c0_30] : memref<1x4x128xf32, #tpu.memory_space<vmem>>, vector<1x1x128xf32>
    tpu.vector_store %arg2[%c0_28, %c2_29, %c0_30], %46 {strides = array<i32>} : memref<1x4x128xf32, #tpu.memory_space<vmem>>, vector<1x1x128xf32>,
    %c0_31 = arith.constant 0 : index
    %c3 = arith.constant 3 : index
    %c0_32 = arith.constant 0 : index
    %48 = vector.load %arg2[%c0_31, %c3, %c0_32] : memref<1x4x128xf32, #tpu.memory_space<vmem>>, vector<1x1x128xf32>
    %49 = arith.mulf %42, %42 : vector<1x32x128xf32>
    %cst_33 = arith.constant dense<0.000000e+00> : vector<128xf32>
    %50 = vector.multi_reduction <add>, %49, %cst_33 [0, 1] : vector<1x32x128xf32> to vector<128xf32>
    %51 = vector.shape_cast %50 : vector<128xf32> to vector<1x1x128xf32>
    %52 = arith.addf %48, %51 : vector<1x1x128xf32>
    %c0_34 = arith.constant 0 : index
    %c3_35 = arith.constant 3 : index
    %c0_36 = arith.constant 0 : index
    %53 = vector.load %arg2[%c0_34, %c3_35, %c0_36] : memref<1x4x128xf32, #tpu.memory_space<vmem>>, vector<1x1x128xf32>
    tpu.vector_store %arg2[%c0_34, %c3_35, %c0_36], %52 {strides = array<i32>} : memref<1x4x128xf32, #tpu.memory_space<vmem>>, vector<1x1x128xf32>,
    %c1_i32 = arith.constant 1 : i32
    %c32_i32_37 = arith.constant 32 : i32
    %54 = arith.muli %c1_i32, %c32_i32_37 : i32
    %55 = tpu.assume_multiple %54, 32 : i32
    %c0_38 = arith.constant 0 : index
    %56 = arith.index_cast %55 : i32 to index
    %c0_39 = arith.constant 0 : index
    %57 = vector.load %arg1[%c0_38, %56, %c0_39] : memref<1x129x129xf32, #tpu.memory_space<vmem>>, vector<1x33x129xf32>
    %58 = vector.extract_strided_slice %57 {offsets = [0, 0, 0], sizes = [1, 32, 128], strides = [1, 1, 1]} : vector<1x33x129xf32> to vector<1x32x128xf32>
    %59 = vector.extract_strided_slice %57 {offsets = [0, 0, 1], sizes = [1, 32, 128], strides = [1, 1, 1]} : vector<1x33x129xf32> to vector<1x32x128xf32>
    %60 = vector.extract_strided_slice %57 {offsets = [0, 1, 0], sizes = [1, 32, 128], strides = [1, 1, 1]} : vector<1x33x129xf32> to vector<1x32x128xf32>
    %61 = vector.extract_strided_slice %57 {offsets = [0, 1, 1], sizes = [1, 32, 128], strides = [1, 1, 1]} : vector<1x33x129xf32> to vector<1x32x128xf32>
    %cst_40 = arith.constant 1.000000e-01 : f32
    %62 = vector.broadcast %cst_40 : f32 to vector<1x32x128xf32>
    %63 = arith.mulf %62, %58 : vector<1x32x128xf32>
    %cst_41 = arith.constant -2.000000e+00 : f32
    %64 = vector.broadcast %cst_41 : f32 to vector<1x32x128xf32>
    %65 = arith.mulf %64, %59 : vector<1x32x128xf32>
    %66 = arith.addf %63, %65 : vector<1x32x128xf32>
    %cst_42 = arith.constant 1.000000e+00 : f32
    %67 = vector.broadcast %cst_42 : f32 to vector<1x32x128xf32>
    %68 = arith.mulf %67, %60 : vector<1x32x128xf32>
    %69 = arith.addf %66, %68 : vector<1x32x128xf32>
    %cst_43 = arith.constant 1.000000e-01 : f32
    %70 = vector.broadcast %cst_43 : f32 to vector<1x32x128xf32>
    %71 = arith.mulf %70, %61 : vector<1x32x128xf32>
    %72 = arith.addf %69, %71 : vector<1x32x128xf32>
    %c0_44 = arith.constant 0 : index
    %c0_45 = arith.constant 0 : index
    %c0_46 = arith.constant 0 : index
    %73 = vector.load %arg2[%c0_44, %c0_45, %c0_46] : memref<1x4x128xf32, #tpu.memory_space<vmem>>, vector<1x1x128xf32>
    %cst_47 = arith.constant dense<0.000000e+00> : vector<128xf32>
    %74 = vector.multi_reduction <add>, %72, %cst_47 [0, 1] : vector<1x32x128xf32> to vector<128xf32>
    %75 = vector.shape_cast %74 : vector<128xf32> to vector<1x1x128xf32>
    %76 = arith.addf %73, %75 : vector<1x1x128xf32>
    %c0_48 = arith.constant 0 : index
    %c0_49 = arith.constant 0 : index
    %c0_50 = arith.constant 0 : index
    %77 = vector.load %arg2[%c0_48, %c0_49, %c0_50] : memref<1x4x128xf32, #tpu.memory_space<vmem>>, vector<1x1x128xf32>
    tpu.vector_store %arg2[%c0_48, %c0_49, %c0_50], %76 {strides = array<i32>} : memref<1x4x128xf32, #tpu.memory_space<vmem>>, vector<1x1x128xf32>,
    %c0_51 = arith.constant 0 : index
    %c1_52 = arith.constant 1 : index
    %c0_53 = arith.constant 0 : index
    %78 = vector.load %arg2[%c0_51, %c1_52, %c0_53] : memref<1x4x128xf32, #tpu.memory_space<vmem>>, vector<1x1x128xf32>
    %79 = arith.mulf %72, %72 : vector<1x32x128xf32>
    %cst_54 = arith.constant dense<0.000000e+00> : vector<128xf32>
    %80 = vector.multi_reduction <add>, %79, %cst_54 [0, 1] : vector<1x32x128xf32> to vector<128xf32>
    %81 = vector.shape_cast %80 : vector<128xf32> to vector<1x1x128xf32>
    %82 = arith.addf %78, %81 : vector<1x1x128xf32>
    %c0_55 = arith.constant 0 : index
    %c1_56 = arith.constant 1 : index
    %c0_57 = arith.constant 0 : index
    %83 = vector.load %arg2[%c0_55, %c1_56, %c0_57] : memref<1x4x128xf32, #tpu.memory_space<vmem>>, vector<1x1x128xf32>
    tpu.vector_store %arg2[%c0_55, %c1_56, %c0_57], %82 {strides = array<i32>} : memref<1x4x128xf32, #tpu.memory_space<vmem>>, vector<1x1x128xf32>,
    %cst_58 = arith.constant 1.000000e-01 : f32
    %84 = vector.broadcast %cst_58 : f32 to vector<1x32x128xf32>
    %85 = arith.mulf %84, %58 : vector<1x32x128xf32>
    %cst_59 = arith.constant 2.000000e+00 : f32
    %86 = vector.broadcast %cst_59 : f32 to vector<1x32x128xf32>
    %87 = arith.mulf %86, %59 : vector<1x32x128xf32>
    %88 = arith.addf %85, %87 : vector<1x32x128xf32>
    %cst_60 = arith.constant -1.000000e+00 : f32
    %89 = vector.broadcast %cst_60 : f32 to vector<1x32x128xf32>
    %90 = arith.mulf %89, %60 : vector<1x32x128xf32>
    %91 = arith.addf %88, %90 : vector<1x32x128xf32>
    %cst_61 = arith.constant 1.000000e-01 : f32
    %92 = vector.broadcast %cst_61 : f32 to vector<1x32x128xf32>
    %93 = arith.mulf %92, %61 : vector<1x32x128xf32>
    %94 = arith.addf %91, %93 : vector<1x32x128xf32>
    %c0_62 = arith.constant 0 : index
    %c2_63 = arith.constant 2 : index
    %c0_64 = arith.constant 0 : index
    %95 = vector.load %arg2[%c0_62, %c2_63, %c0_64] : memref<1x4x128xf32, #tpu.memory_space<vmem>>, vector<1x1x128xf32>
    %cst_65 = arith.constant dense<0.000000e+00> : vector<128xf32>
    %96 = vector.multi_reduction <add>, %94, %cst_65 [0, 1] : vector<1x32x128xf32> to vector<128xf32>
    %97 = vector.shape_cast %96 : vector<128xf32> to vector<1x1x128xf32>
    %98 = arith.addf %95, %97 : vector<1x1x128xf32>
    %c0_66 = arith.constant 0 : index
    %c2_67 = arith.constant 2 : index
    %c0_68 = arith.constant 0 : index
    %99 = vector.load %arg2[%c0_66, %c2_67, %c0_68] : memref<1x4x128xf32, #tpu.memory_space<vmem>>, vector<1x1x128xf32>
    tpu.vector_store %arg2[%c0_66, %c2_67, %c0_68], %98 {strides = array<i32>} : memref<1x4x128xf32, #tpu.memory_space<vmem>>, vector<1x1x128xf32>,
    %c0_69 = arith.constant 0 : index
    %c3_70 = arith.constant 3 : index
    %c0_71 = arith.constant 0 : index
    %100 = vector.load %arg2[%c0_69, %c3_70, %c0_71] : memref<1x4x128xf32, #tpu.memory_space<vmem>>, vector<1x1x128xf32>
    %101 = arith.mulf %94, %94 : vector<1x32x128xf32>
    %cst_72 = arith.constant dense<0.000000e+00> : vector<128xf32>
    %102 = vector.multi_reduction <add>, %101, %cst_72 [0, 1] : vector<1x32x128xf32> to vector<128xf32>
    %103 = vector.shape_cast %102 : vector<128xf32> to vector<1x1x128xf32>
    %104 = arith.addf %100, %103 : vector<1x1x128xf32>
    %c0_73 = arith.constant 0 : index
    %c3_74 = arith.constant 3 : index
    %c0_75 = arith.constant 0 : index
    %105 = vector.load %arg2[%c0_73, %c3_74, %c0_75] : memref<1x4x128xf32, #tpu.memory_space<vmem>>, vector<1x1x128xf32>
    tpu.vector_store %arg2[%c0_73, %c3_74, %c0_75], %104 {strides = array<i32>} : memref<1x4x128xf32, #tpu.memory_space<vmem>>, vector<1x1x128xf32>,
    %c2_i32 = arith.constant 2 : i32
    %c32_i32_76 = arith.constant 32 : i32
    %106 = arith.muli %c2_i32, %c32_i32_76 : i32
    %107 = tpu.assume_multiple %106, 32 : i32
    %c0_77 = arith.constant 0 : index
    %108 = arith.index_cast %107 : i32 to index
    %c0_78 = arith.constant 0 : index
    %109 = vector.load %arg1[%c0_77, %108, %c0_78] : memref<1x129x129xf32, #tpu.memory_space<vmem>>, vector<1x33x129xf32>
    %110 = vector.extract_strided_slice %109 {offsets = [0, 0, 0], sizes = [1, 32, 128], strides = [1, 1, 1]} : vector<1x33x129xf32> to vector<1x32x128xf32>
    %111 = vector.extract_strided_slice %109 {offsets = [0, 0, 1], sizes = [1, 32, 128], strides = [1, 1, 1]} : vector<1x33x129xf32> to vector<1x32x128xf32>
    %112 = vector.extract_strided_slice %109 {offsets = [0, 1, 0], sizes = [1, 32, 128], strides = [1, 1, 1]} : vector<1x33x129xf32> to vector<1x32x128xf32>
    %113 = vector.extract_strided_slice %109 {offsets = [0, 1, 1], sizes = [1, 32, 128], strides = [1, 1, 1]} : vector<1x33x129xf32> to vector<1x32x128xf32>
    %cst_79 = arith.constant 1.000000e-01 : f32
    %114 = vector.broadcast %cst_79 : f32 to vector<1x32x128xf32>
    %115 = arith.mulf %114, %110 : vector<1x32x128xf32>
    %cst_80 = arith.constant -2.000000e+00 : f32
    %116 = vector.broadcast %cst_80 : f32 to vector<1x32x128xf32>
    %117 = arith.mulf %116, %111 : vector<1x32x128xf32>
    %118 = arith.addf %115, %117 : vector<1x32x128xf32>
    %cst_81 = arith.constant 1.000000e+00 : f32
    %119 = vector.broadcast %cst_81 : f32 to vector<1x32x128xf32>
    %120 = arith.mulf %119, %112 : vector<1x32x128xf32>
    %121 = arith.addf %118, %120 : vector<1x32x128xf32>
    %cst_82 = arith.constant 1.000000e-01 : f32
    %122 = vector.broadcast %cst_82 : f32 to vector<1x32x128xf32>
    %123 = arith.mulf %122, %113 : vector<1x32x128xf32>
    %124 = arith.addf %121, %123 : vector<1x32x128xf32>
    %c0_83 = arith.constant 0 : index
    %c0_84 = arith.constant 0 : index
    %c0_85 = arith.constant 0 : index
    %125 = vector.load %arg2[%c0_83, %c0_84, %c0_85] : memref<1x4x128xf32, #tpu.memory_space<vmem>>, vector<1x1x128xf32>
    %cst_86 = arith.constant dense<0.000000e+00> : vector<128xf32>
    %126 = vector.multi_reduction <add>, %124, %cst_86 [0, 1] : vector<1x32x128xf32> to vector<128xf32>
    %127 = vector.shape_cast %126 : vector<128xf32> to vector<1x1x128xf32>
    %128 = arith.addf %125, %127 : vector<1x1x128xf32>
    %c0_87 = arith.constant 0 : index
    %c0_88 = arith.constant 0 : index
    %c0_89 = arith.constant 0 : index
    %129 = vector.load %arg2[%c0_87, %c0_88, %c0_89] : memref<1x4x128xf32, #tpu.memory_space<vmem>>, vector<1x1x128xf32>
    tpu.vector_store %arg2[%c0_87, %c0_88, %c0_89], %128 {strides = array<i32>} : memref<1x4x128xf32, #tpu.memory_space<vmem>>, vector<1x1x128xf32>,
    %c0_90 = arith.constant 0 : index
    %c1_91 = arith.constant 1 : index
    %c0_92 = arith.constant 0 : index
    %130 = vector.load %arg2[%c0_90, %c1_91, %c0_92] : memref<1x4x128xf32, #tpu.memory_space<vmem>>, vector<1x1x128xf32>
    %131 = arith.mulf %124, %124 : vector<1x32x128xf32>
    %cst_93 = arith.constant dense<0.000000e+00> : vector<128xf32>
    %132 = vector.multi_reduction <add>, %131, %cst_93 [0, 1] : vector<1x32x128xf32> to vector<128xf32>
    %133 = vector.shape_cast %132 : vector<128xf32> to vector<1x1x128xf32>
    %134 = arith.addf %130, %133 : vector<1x1x128xf32>
    %c0_94 = arith.constant 0 : index
    %c1_95 = arith.constant 1 : index
    %c0_96 = arith.constant 0 : index
    %135 = vector.load %arg2[%c0_94, %c1_95, %c0_96] : memref<1x4x128xf32, #tpu.memory_space<vmem>>, vector<1x1x128xf32>
    tpu.vector_store %arg2[%c0_94, %c1_95, %c0_96], %134 {strides = array<i32>} : memref<1x4x128xf32, #tpu.memory_space<vmem>>, vector<1x1x128xf32>,
    %cst_97 = arith.constant 1.000000e-01 : f32
    %136 = vector.broadcast %cst_97 : f32 to vector<1x32x128xf32>
    %137 = arith.mulf %136, %110 : vector<1x32x128xf32>
    %cst_98 = arith.constant 2.000000e+00 : f32
    %138 = vector.broadcast %cst_98 : f32 to vector<1x32x128xf32>
    %139 = arith.mulf %138, %111 : vector<1x32x128xf32>
    %140 = arith.addf %137, %139 : vector<1x32x128xf32>
    %cst_99 = arith.constant -1.000000e+00 : f32
    %141 = vector.broadcast %cst_99 : f32 to vector<1x32x128xf32>
    %142 = arith.mulf %141, %112 : vector<1x32x128xf32>
    %143 = arith.addf %140, %142 : vector<1x32x128xf32>
    %cst_100 = arith.constant 1.000000e-01 : f32
    %144 = vector.broadcast %cst_100 : f32 to vector<1x32x128xf32>
    %145 = arith.mulf %144, %113 : vector<1x32x128xf32>
    %146 = arith.addf %143, %145 : vector<1x32x128xf32>
    %c0_101 = arith.constant 0 : index
    %c2_102 = arith.constant 2 : index
    %c0_103 = arith.constant 0 : index
    %147 = vector.load %arg2[%c0_101, %c2_102, %c0_103] : memref<1x4x128xf32, #tpu.memory_space<vmem>>, vector<1x1x128xf32>
    %cst_104 = arith.constant dense<0.000000e+00> : vector<128xf32>
    %148 = vector.multi_reduction <add>, %146, %cst_104 [0, 1] : vector<1x32x128xf32> to vector<128xf32>
    %149 = vector.shape_cast %148 : vector<128xf32> to vector<1x1x128xf32>
    %150 = arith.addf %147, %149 : vector<1x1x128xf32>
    %c0_105 = arith.constant 0 : index
    %c2_106 = arith.constant 2 : index
    %c0_107 = arith.constant 0 : index
    %151 = vector.load %arg2[%c0_105, %c2_106, %c0_107] : memref<1x4x128xf32, #tpu.memory_space<vmem>>, vector<1x1x128xf32>
    tpu.vector_store %arg2[%c0_105, %c2_106, %c0_107], %150 {strides = array<i32>} : memref<1x4x128xf32, #tpu.memory_space<vmem>>, vector<1x1x128xf32>,
    %c0_108 = arith.constant 0 : index
    %c3_109 = arith.constant 3 : index
    %c0_110 = arith.constant 0 : index
    %152 = vector.load %arg2[%c0_108, %c3_109, %c0_110] : memref<1x4x128xf32, #tpu.memory_space<vmem>>, vector<1x1x128xf32>
    %153 = arith.mulf %146, %146 : vector<1x32x128xf32>
    %cst_111 = arith.constant dense<0.000000e+00> : vector<128xf32>
    %154 = vector.multi_reduction <add>, %153, %cst_111 [0, 1] : vector<1x32x128xf32> to vector<128xf32>
    %155 = vector.shape_cast %154 : vector<128xf32> to vector<1x1x128xf32>
    %156 = arith.addf %152, %155 : vector<1x1x128xf32>
    %c0_112 = arith.constant 0 : index
    %c3_113 = arith.constant 3 : index
    %c0_114 = arith.constant 0 : index
    %157 = vector.load %arg2[%c0_112, %c3_113, %c0_114] : memref<1x4x128xf32, #tpu.memory_space<vmem>>, vector<1x1x128xf32>
    tpu.vector_store %arg2[%c0_112, %c3_113, %c0_114], %156 {strides = array<i32>} : memref<1x4x128xf32, #tpu.memory_space<vmem>>, vector<1x1x128xf32>,
    %c3_i32 = arith.constant 3 : i32
    %c32_i32_115 = arith.constant 32 : i32
    %158 = arith.muli %c3_i32, %c32_i32_115 : i32
    %159 = tpu.assume_multiple %158, 32 : i32
    %c0_116 = arith.constant 0 : index
    %160 = arith.index_cast %159 : i32 to index
    %c0_117 = arith.constant 0 : index
    %161 = vector.load %arg1[%c0_116, %160, %c0_117] : memref<1x129x129xf32, #tpu.memory_space<vmem>>, vector<1x33x129xf32>
    %162 = vector.extract_strided_slice %161 {offsets = [0, 0, 0], sizes = [1, 32, 128], strides = [1, 1, 1]} : vector<1x33x129xf32> to vector<1x32x128xf32>
    %163 = vector.extract_strided_slice %161 {offsets = [0, 0, 1], sizes = [1, 32, 128], strides = [1, 1, 1]} : vector<1x33x129xf32> to vector<1x32x128xf32>
    %164 = vector.extract_strided_slice %161 {offsets = [0, 1, 0], sizes = [1, 32, 128], strides = [1, 1, 1]} : vector<1x33x129xf32> to vector<1x32x128xf32>
    %165 = vector.extract_strided_slice %161 {offsets = [0, 1, 1], sizes = [1, 32, 128], strides = [1, 1, 1]} : vector<1x33x129xf32> to vector<1x32x128xf32>
    %cst_118 = arith.constant 1.000000e-01 : f32
    %166 = vector.broadcast %cst_118 : f32 to vector<1x32x128xf32>
    %167 = arith.mulf %166, %162 : vector<1x32x128xf32>
    %cst_119 = arith.constant -2.000000e+00 : f32
    %168 = vector.broadcast %cst_119 : f32 to vector<1x32x128xf32>
    %169 = arith.mulf %168, %163 : vector<1x32x128xf32>
    %170 = arith.addf %167, %169 : vector<1x32x128xf32>
    %cst_120 = arith.constant 1.000000e+00 : f32
    %171 = vector.broadcast %cst_120 : f32 to vector<1x32x128xf32>
    %172 = arith.mulf %171, %164 : vector<1x32x128xf32>
    %173 = arith.addf %170, %172 : vector<1x32x128xf32>
    %cst_121 = arith.constant 1.000000e-01 : f32
    %174 = vector.broadcast %cst_121 : f32 to vector<1x32x128xf32>
    %175 = arith.mulf %174, %165 : vector<1x32x128xf32>
    %176 = arith.addf %173, %175 : vector<1x32x128xf32>
    %c0_122 = arith.constant 0 : index
    %c0_123 = arith.constant 0 : index
    %c0_124 = arith.constant 0 : index
    %177 = vector.load %arg2[%c0_122, %c0_123, %c0_124] : memref<1x4x128xf32, #tpu.memory_space<vmem>>, vector<1x1x128xf32>
    %cst_125 = arith.constant dense<0.000000e+00> : vector<128xf32>
    %178 = vector.multi_reduction <add>, %176, %cst_125 [0, 1] : vector<1x32x128xf32> to vector<128xf32>
    %179 = vector.shape_cast %178 : vector<128xf32> to vector<1x1x128xf32>
    %180 = arith.addf %177, %179 : vector<1x1x128xf32>
    %c0_126 = arith.constant 0 : index
    %c0_127 = arith.constant 0 : index
    %c0_128 = arith.constant 0 : index
    %181 = vector.load %arg2[%c0_126, %c0_127, %c0_128] : memref<1x4x128xf32, #tpu.memory_space<vmem>>, vector<1x1x128xf32>
    tpu.vector_store %arg2[%c0_126, %c0_127, %c0_128], %180 {strides = array<i32>} : memref<1x4x128xf32, #tpu.memory_space<vmem>>, vector<1x1x128xf32>,
    %c0_129 = arith.constant 0 : index
    %c1_130 = arith.constant 1 : index
    %c0_131 = arith.constant 0 : index
    %182 = vector.load %arg2[%c0_129, %c1_130, %c0_131] : memref<1x4x128xf32, #tpu.memory_space<vmem>>, vector<1x1x128xf32>
    %183 = arith.mulf %176, %176 : vector<1x32x128xf32>
    %cst_132 = arith.constant dense<0.000000e+00> : vector<128xf32>
    %184 = vector.multi_reduction <add>, %183, %cst_132 [0, 1] : vector<1x32x128xf32> to vector<128xf32>
    %185 = vector.shape_cast %184 : vector<128xf32> to vector<1x1x128xf32>
    %186 = arith.addf %182, %185 : vector<1x1x128xf32>
    %c0_133 = arith.constant 0 : index
    %c1_134 = arith.constant 1 : index
    %c0_135 = arith.constant 0 : index
    %187 = vector.load %arg2[%c0_133, %c1_134, %c0_135] : memref<1x4x128xf32, #tpu.memory_space<vmem>>, vector<1x1x128xf32>
    tpu.vector_store %arg2[%c0_133, %c1_134, %c0_135], %186 {strides = array<i32>} : memref<1x4x128xf32, #tpu.memory_space<vmem>>, vector<1x1x128xf32>,
    %cst_136 = arith.constant 1.000000e-01 : f32
    %188 = vector.broadcast %cst_136 : f32 to vector<1x32x128xf32>
    %189 = arith.mulf %188, %162 : vector<1x32x128xf32>
    %cst_137 = arith.constant 2.000000e+00 : f32
    %190 = vector.broadcast %cst_137 : f32 to vector<1x32x128xf32>
    %191 = arith.mulf %190, %163 : vector<1x32x128xf32>
    %192 = arith.addf %189, %191 : vector<1x32x128xf32>
    %cst_138 = arith.constant -1.000000e+00 : f32
    %193 = vector.broadcast %cst_138 : f32 to vector<1x32x128xf32>
    %194 = arith.mulf %193, %164 : vector<1x32x128xf32>
    %195 = arith.addf %192, %194 : vector<1x32x128xf32>
    %cst_139 = arith.constant 1.000000e-01 : f32
    %196 = vector.broadcast %cst_139 : f32 to vector<1x32x128xf32>
    %197 = arith.mulf %196, %165 : vector<1x32x128xf32>
    %198 = arith.addf %195, %197 : vector<1x32x128xf32>
    %c0_140 = arith.constant 0 : index
    %c2_141 = arith.constant 2 : index
    %c0_142 = arith.constant 0 : index
    %199 = vector.load %arg2[%c0_140, %c2_141, %c0_142] : memref<1x4x128xf32, #tpu.memory_space<vmem>>, vector<1x1x128xf32>
    %cst_143 = arith.constant dense<0.000000e+00> : vector<128xf32>
    %200 = vector.multi_reduction <add>, %198, %cst_143 [0, 1] : vector<1x32x128xf32> to vector<128xf32>
    %201 = vector.shape_cast %200 : vector<128xf32> to vector<1x1x128xf32>
    %202 = arith.addf %199, %201 : vector<1x1x128xf32>
    %c0_144 = arith.constant 0 : index
    %c2_145 = arith.constant 2 : index
    %c0_146 = arith.constant 0 : index
    %203 = vector.load %arg2[%c0_144, %c2_145, %c0_146] : memref<1x4x128xf32, #tpu.memory_space<vmem>>, vector<1x1x128xf32>
    tpu.vector_store %arg2[%c0_144, %c2_145, %c0_146], %202 {strides = array<i32>} : memref<1x4x128xf32, #tpu.memory_space<vmem>>, vector<1x1x128xf32>,
    %c0_147 = arith.constant 0 : index
    %c3_148 = arith.constant 3 : index
    %c0_149 = arith.constant 0 : index
    %204 = vector.load %arg2[%c0_147, %c3_148, %c0_149] : memref<1x4x128xf32, #tpu.memory_space<vmem>>, vector<1x1x128xf32>
    %205 = arith.mulf %198, %198 : vector<1x32x128xf32>
    %cst_150 = arith.constant dense<0.000000e+00> : vector<128xf32>
    %206 = vector.multi_reduction <add>, %205, %cst_150 [0, 1] : vector<1x32x128xf32> to vector<128xf32>
    %207 = vector.shape_cast %206 : vector<128xf32> to vector<1x1x128xf32>
    %208 = arith.addf %204, %207 : vector<1x1x128xf32>
    %c0_151 = arith.constant 0 : index
    %c3_152 = arith.constant 3 : index
    %c0_153 = arith.constant 0 : index
    %209 = vector.load %arg2[%c0_151, %c3_152, %c0_153] : memref<1x4x128xf32, #tpu.memory_space<vmem>>, vector<1x1x128xf32>
    tpu.vector_store %arg2[%c0_151, %c3_152, %c0_153], %208 {strides = array<i32>} : memref<1x4x128xf32, #tpu.memory_space<vmem>>, vector<1x1x128xf32>,
    %c4_i32 = arith.constant 4 : i32
    return
  }
  func.func @transform_0(%arg0: i32) -> (i32, i32, i32) {
    %c0_i32 = arith.constant 0 : i32
    %c0_i32_0 = arith.constant 0 : i32
    %c0_i32_1 = arith.constant 0 : i32
    return %arg0, %c0_i32, %c0_i32_0 : i32, i32, i32
  }
  func.func @transform_1(%arg0: i32) -> (i32, i32, i32) {
    %c0_i32 = arith.constant 0 : i32
    %c0_i32_0 = arith.constant 0 : i32
    %c0_i32_1 = arith.constant 0 : i32
    return %arg0, %c0_i32, %c0_i32_0 : i32, i32, i32
  }
}

module attributes {stable_mosaic.version = 11 : i64} {
  func.func @conv_bn_kernel(%arg0: i32, %arg1: memref<2xf32, #tpu.memory_space<smem>>, %arg2: memref<2xf32, #tpu.memory_space<smem>>, %arg3: memref<1x129x129xf32, #tpu.memory_space<vmem>>, %arg4: memref<1x2x128x128xf32, #tpu.memory_space<vmem>>) attributes {dimension_semantics = [#tpu.dimension_semantics<parallel>], iteration_bounds = array<i64: 2>, scalar_prefetch = 0 : i64, scratch_operands = 0 : i64, tpu.core_type = #tpu.core_type<tc>, window_params = [{transform_indices = @transform_0, window_bounds = array<i64: 2>}, {transform_indices = @transform_1, window_bounds = array<i64: 2>}, {transform_indices = @transform_2, window_bounds = array<i64: 1, 129, 129>}, {transform_indices = @transform_3, window_bounds = array<i64: 1, 2, 128, 128>}]} {
    %c0 = arith.constant 0 : index
    %0 = memref.load %arg1[%c0] : memref<2xf32, #tpu.memory_space<smem>>
    %c1 = arith.constant 1 : index
    %1 = memref.load %arg1[%c1] : memref<2xf32, #tpu.memory_space<smem>>
    %c0_0 = arith.constant 0 : index
    %2 = memref.load %arg2[%c0_0] : memref<2xf32, #tpu.memory_space<smem>>
    %c1_1 = arith.constant 1 : index
    %3 = memref.load %arg2[%c1_1] : memref<2xf32, #tpu.memory_space<smem>>
    %c0_i32 = arith.constant 0 : i32
    %c32_i32 = arith.constant 32 : i32
    %4 = arith.muli %c0_i32, %c32_i32 : i32
    %5 = tpu.assume_multiple %4, 32 : i32
    %c0_2 = arith.constant 0 : index
    %6 = arith.index_cast %5 : i32 to index
    %c0_3 = arith.constant 0 : index
    %7 = vector.load %arg3[%c0_2, %6, %c0_3] : memref<1x129x129xf32, #tpu.memory_space<vmem>>, vector<1x33x129xf32>
    %8 = vector.extract_strided_slice %7 {offsets = [0, 0, 0], sizes = [1, 32, 128], strides = [1, 1, 1]} : vector<1x33x129xf32> to vector<1x32x128xf32>
    %9 = vector.extract_strided_slice %7 {offsets = [0, 0, 1], sizes = [1, 32, 128], strides = [1, 1, 1]} : vector<1x33x129xf32> to vector<1x32x128xf32>
    %10 = vector.extract_strided_slice %7 {offsets = [0, 1, 0], sizes = [1, 32, 128], strides = [1, 1, 1]} : vector<1x33x129xf32> to vector<1x32x128xf32>
    %11 = vector.extract_strided_slice %7 {offsets = [0, 1, 1], sizes = [1, 32, 128], strides = [1, 1, 1]} : vector<1x33x129xf32> to vector<1x32x128xf32>
    %cst = arith.constant 1.000000e-01 : f32
    %12 = vector.broadcast %cst : f32 to vector<1x32x128xf32>
    %13 = arith.mulf %12, %8 : vector<1x32x128xf32>
    %cst_4 = arith.constant -2.000000e+00 : f32
    %14 = vector.broadcast %cst_4 : f32 to vector<1x32x128xf32>
    %15 = arith.mulf %14, %9 : vector<1x32x128xf32>
    %16 = arith.addf %13, %15 : vector<1x32x128xf32>
    %cst_5 = arith.constant 1.000000e+00 : f32
    %17 = vector.broadcast %cst_5 : f32 to vector<1x32x128xf32>
    %18 = arith.mulf %17, %10 : vector<1x32x128xf32>
    %19 = arith.addf %16, %18 : vector<1x32x128xf32>
    %cst_6 = arith.constant 1.000000e-01 : f32
    %20 = vector.broadcast %cst_6 : f32 to vector<1x32x128xf32>
    %21 = arith.mulf %20, %11 : vector<1x32x128xf32>
    %22 = arith.addf %19, %21 : vector<1x32x128xf32>
    %23 = vector.broadcast %0 : f32 to vector<1x32x128xf32>
    %24 = arith.mulf %22, %23 : vector<1x32x128xf32>
    %25 = vector.broadcast %2 : f32 to vector<1x32x128xf32>
    %26 = arith.addf %24, %25 : vector<1x32x128xf32>
    %27 = vector.shape_cast %26 : vector<1x32x128xf32> to vector<1x1x32x128xf32>
    %c0_7 = arith.constant 0 : index
    %c0_8 = arith.constant 0 : index
    %28 = arith.index_cast %5 : i32 to index
    %c0_9 = arith.constant 0 : index
    %29 = vector.load %arg4[%c0_7, %c0_8, %28, %c0_9] : memref<1x2x128x128xf32, #tpu.memory_space<vmem>>, vector<1x1x32x128xf32>
    tpu.vector_store %arg4[%c0_7, %c0_8, %28, %c0_9], %27 {strides = array<i32>} : memref<1x2x128x128xf32, #tpu.memory_space<vmem>>, vector<1x1x32x128xf32>,
    %cst_10 = arith.constant 1.000000e-01 : f32
    %30 = vector.broadcast %cst_10 : f32 to vector<1x32x128xf32>
    %31 = arith.mulf %30, %8 : vector<1x32x128xf32>
    %cst_11 = arith.constant 2.000000e+00 : f32
    %32 = vector.broadcast %cst_11 : f32 to vector<1x32x128xf32>
    %33 = arith.mulf %32, %9 : vector<1x32x128xf32>
    %34 = arith.addf %31, %33 : vector<1x32x128xf32>
    %cst_12 = arith.constant -1.000000e+00 : f32
    %35 = vector.broadcast %cst_12 : f32 to vector<1x32x128xf32>
    %36 = arith.mulf %35, %10 : vector<1x32x128xf32>
    %37 = arith.addf %34, %36 : vector<1x32x128xf32>
    %cst_13 = arith.constant 1.000000e-01 : f32
    %38 = vector.broadcast %cst_13 : f32 to vector<1x32x128xf32>
    %39 = arith.mulf %38, %11 : vector<1x32x128xf32>
    %40 = arith.addf %37, %39 : vector<1x32x128xf32>
    %41 = vector.broadcast %1 : f32 to vector<1x32x128xf32>
    %42 = arith.mulf %40, %41 : vector<1x32x128xf32>
    %43 = vector.broadcast %3 : f32 to vector<1x32x128xf32>
    %44 = arith.addf %42, %43 : vector<1x32x128xf32>
    %45 = vector.shape_cast %44 : vector<1x32x128xf32> to vector<1x1x32x128xf32>
    %c0_14 = arith.constant 0 : index
    %c1_15 = arith.constant 1 : index
    %46 = arith.index_cast %5 : i32 to index
    %c0_16 = arith.constant 0 : index
    %47 = vector.load %arg4[%c0_14, %c1_15, %46, %c0_16] : memref<1x2x128x128xf32, #tpu.memory_space<vmem>>, vector<1x1x32x128xf32>
    tpu.vector_store %arg4[%c0_14, %c1_15, %46, %c0_16], %45 {strides = array<i32>} : memref<1x2x128x128xf32, #tpu.memory_space<vmem>>, vector<1x1x32x128xf32>,
    %c1_i32 = arith.constant 1 : i32
    %c32_i32_17 = arith.constant 32 : i32
    %48 = arith.muli %c1_i32, %c32_i32_17 : i32
    %49 = tpu.assume_multiple %48, 32 : i32
    %c0_18 = arith.constant 0 : index
    %50 = arith.index_cast %49 : i32 to index
    %c0_19 = arith.constant 0 : index
    %51 = vector.load %arg3[%c0_18, %50, %c0_19] : memref<1x129x129xf32, #tpu.memory_space<vmem>>, vector<1x33x129xf32>
    %52 = vector.extract_strided_slice %51 {offsets = [0, 0, 0], sizes = [1, 32, 128], strides = [1, 1, 1]} : vector<1x33x129xf32> to vector<1x32x128xf32>
    %53 = vector.extract_strided_slice %51 {offsets = [0, 0, 1], sizes = [1, 32, 128], strides = [1, 1, 1]} : vector<1x33x129xf32> to vector<1x32x128xf32>
    %54 = vector.extract_strided_slice %51 {offsets = [0, 1, 0], sizes = [1, 32, 128], strides = [1, 1, 1]} : vector<1x33x129xf32> to vector<1x32x128xf32>
    %55 = vector.extract_strided_slice %51 {offsets = [0, 1, 1], sizes = [1, 32, 128], strides = [1, 1, 1]} : vector<1x33x129xf32> to vector<1x32x128xf32>
    %cst_20 = arith.constant 1.000000e-01 : f32
    %56 = vector.broadcast %cst_20 : f32 to vector<1x32x128xf32>
    %57 = arith.mulf %56, %52 : vector<1x32x128xf32>
    %cst_21 = arith.constant -2.000000e+00 : f32
    %58 = vector.broadcast %cst_21 : f32 to vector<1x32x128xf32>
    %59 = arith.mulf %58, %53 : vector<1x32x128xf32>
    %60 = arith.addf %57, %59 : vector<1x32x128xf32>
    %cst_22 = arith.constant 1.000000e+00 : f32
    %61 = vector.broadcast %cst_22 : f32 to vector<1x32x128xf32>
    %62 = arith.mulf %61, %54 : vector<1x32x128xf32>
    %63 = arith.addf %60, %62 : vector<1x32x128xf32>
    %cst_23 = arith.constant 1.000000e-01 : f32
    %64 = vector.broadcast %cst_23 : f32 to vector<1x32x128xf32>
    %65 = arith.mulf %64, %55 : vector<1x32x128xf32>
    %66 = arith.addf %63, %65 : vector<1x32x128xf32>
    %67 = vector.broadcast %0 : f32 to vector<1x32x128xf32>
    %68 = arith.mulf %66, %67 : vector<1x32x128xf32>
    %69 = vector.broadcast %2 : f32 to vector<1x32x128xf32>
    %70 = arith.addf %68, %69 : vector<1x32x128xf32>
    %71 = vector.shape_cast %70 : vector<1x32x128xf32> to vector<1x1x32x128xf32>
    %c0_24 = arith.constant 0 : index
    %c0_25 = arith.constant 0 : index
    %72 = arith.index_cast %49 : i32 to index
    %c0_26 = arith.constant 0 : index
    %73 = vector.load %arg4[%c0_24, %c0_25, %72, %c0_26] : memref<1x2x128x128xf32, #tpu.memory_space<vmem>>, vector<1x1x32x128xf32>
    tpu.vector_store %arg4[%c0_24, %c0_25, %72, %c0_26], %71 {strides = array<i32>} : memref<1x2x128x128xf32, #tpu.memory_space<vmem>>, vector<1x1x32x128xf32>,
    %cst_27 = arith.constant 1.000000e-01 : f32
    %74 = vector.broadcast %cst_27 : f32 to vector<1x32x128xf32>
    %75 = arith.mulf %74, %52 : vector<1x32x128xf32>
    %cst_28 = arith.constant 2.000000e+00 : f32
    %76 = vector.broadcast %cst_28 : f32 to vector<1x32x128xf32>
    %77 = arith.mulf %76, %53 : vector<1x32x128xf32>
    %78 = arith.addf %75, %77 : vector<1x32x128xf32>
    %cst_29 = arith.constant -1.000000e+00 : f32
    %79 = vector.broadcast %cst_29 : f32 to vector<1x32x128xf32>
    %80 = arith.mulf %79, %54 : vector<1x32x128xf32>
    %81 = arith.addf %78, %80 : vector<1x32x128xf32>
    %cst_30 = arith.constant 1.000000e-01 : f32
    %82 = vector.broadcast %cst_30 : f32 to vector<1x32x128xf32>
    %83 = arith.mulf %82, %55 : vector<1x32x128xf32>
    %84 = arith.addf %81, %83 : vector<1x32x128xf32>
    %85 = vector.broadcast %1 : f32 to vector<1x32x128xf32>
    %86 = arith.mulf %84, %85 : vector<1x32x128xf32>
    %87 = vector.broadcast %3 : f32 to vector<1x32x128xf32>
    %88 = arith.addf %86, %87 : vector<1x32x128xf32>
    %89 = vector.shape_cast %88 : vector<1x32x128xf32> to vector<1x1x32x128xf32>
    %c0_31 = arith.constant 0 : index
    %c1_32 = arith.constant 1 : index
    %90 = arith.index_cast %49 : i32 to index
    %c0_33 = arith.constant 0 : index
    %91 = vector.load %arg4[%c0_31, %c1_32, %90, %c0_33] : memref<1x2x128x128xf32, #tpu.memory_space<vmem>>, vector<1x1x32x128xf32>
    tpu.vector_store %arg4[%c0_31, %c1_32, %90, %c0_33], %89 {strides = array<i32>} : memref<1x2x128x128xf32, #tpu.memory_space<vmem>>, vector<1x1x32x128xf32>,
    %c2_i32 = arith.constant 2 : i32
    %c32_i32_34 = arith.constant 32 : i32
    %92 = arith.muli %c2_i32, %c32_i32_34 : i32
    %93 = tpu.assume_multiple %92, 32 : i32
    %c0_35 = arith.constant 0 : index
    %94 = arith.index_cast %93 : i32 to index
    %c0_36 = arith.constant 0 : index
    %95 = vector.load %arg3[%c0_35, %94, %c0_36] : memref<1x129x129xf32, #tpu.memory_space<vmem>>, vector<1x33x129xf32>
    %96 = vector.extract_strided_slice %95 {offsets = [0, 0, 0], sizes = [1, 32, 128], strides = [1, 1, 1]} : vector<1x33x129xf32> to vector<1x32x128xf32>
    %97 = vector.extract_strided_slice %95 {offsets = [0, 0, 1], sizes = [1, 32, 128], strides = [1, 1, 1]} : vector<1x33x129xf32> to vector<1x32x128xf32>
    %98 = vector.extract_strided_slice %95 {offsets = [0, 1, 0], sizes = [1, 32, 128], strides = [1, 1, 1]} : vector<1x33x129xf32> to vector<1x32x128xf32>
    %99 = vector.extract_strided_slice %95 {offsets = [0, 1, 1], sizes = [1, 32, 128], strides = [1, 1, 1]} : vector<1x33x129xf32> to vector<1x32x128xf32>
    %cst_37 = arith.constant 1.000000e-01 : f32
    %100 = vector.broadcast %cst_37 : f32 to vector<1x32x128xf32>
    %101 = arith.mulf %100, %96 : vector<1x32x128xf32>
    %cst_38 = arith.constant -2.000000e+00 : f32
    %102 = vector.broadcast %cst_38 : f32 to vector<1x32x128xf32>
    %103 = arith.mulf %102, %97 : vector<1x32x128xf32>
    %104 = arith.addf %101, %103 : vector<1x32x128xf32>
    %cst_39 = arith.constant 1.000000e+00 : f32
    %105 = vector.broadcast %cst_39 : f32 to vector<1x32x128xf32>
    %106 = arith.mulf %105, %98 : vector<1x32x128xf32>
    %107 = arith.addf %104, %106 : vector<1x32x128xf32>
    %cst_40 = arith.constant 1.000000e-01 : f32
    %108 = vector.broadcast %cst_40 : f32 to vector<1x32x128xf32>
    %109 = arith.mulf %108, %99 : vector<1x32x128xf32>
    %110 = arith.addf %107, %109 : vector<1x32x128xf32>
    %111 = vector.broadcast %0 : f32 to vector<1x32x128xf32>
    %112 = arith.mulf %110, %111 : vector<1x32x128xf32>
    %113 = vector.broadcast %2 : f32 to vector<1x32x128xf32>
    %114 = arith.addf %112, %113 : vector<1x32x128xf32>
    %115 = vector.shape_cast %114 : vector<1x32x128xf32> to vector<1x1x32x128xf32>
    %c0_41 = arith.constant 0 : index
    %c0_42 = arith.constant 0 : index
    %116 = arith.index_cast %93 : i32 to index
    %c0_43 = arith.constant 0 : index
    %117 = vector.load %arg4[%c0_41, %c0_42, %116, %c0_43] : memref<1x2x128x128xf32, #tpu.memory_space<vmem>>, vector<1x1x32x128xf32>
    tpu.vector_store %arg4[%c0_41, %c0_42, %116, %c0_43], %115 {strides = array<i32>} : memref<1x2x128x128xf32, #tpu.memory_space<vmem>>, vector<1x1x32x128xf32>,
    %cst_44 = arith.constant 1.000000e-01 : f32
    %118 = vector.broadcast %cst_44 : f32 to vector<1x32x128xf32>
    %119 = arith.mulf %118, %96 : vector<1x32x128xf32>
    %cst_45 = arith.constant 2.000000e+00 : f32
    %120 = vector.broadcast %cst_45 : f32 to vector<1x32x128xf32>
    %121 = arith.mulf %120, %97 : vector<1x32x128xf32>
    %122 = arith.addf %119, %121 : vector<1x32x128xf32>
    %cst_46 = arith.constant -1.000000e+00 : f32
    %123 = vector.broadcast %cst_46 : f32 to vector<1x32x128xf32>
    %124 = arith.mulf %123, %98 : vector<1x32x128xf32>
    %125 = arith.addf %122, %124 : vector<1x32x128xf32>
    %cst_47 = arith.constant 1.000000e-01 : f32
    %126 = vector.broadcast %cst_47 : f32 to vector<1x32x128xf32>
    %127 = arith.mulf %126, %99 : vector<1x32x128xf32>
    %128 = arith.addf %125, %127 : vector<1x32x128xf32>
    %129 = vector.broadcast %1 : f32 to vector<1x32x128xf32>
    %130 = arith.mulf %128, %129 : vector<1x32x128xf32>
    %131 = vector.broadcast %3 : f32 to vector<1x32x128xf32>
    %132 = arith.addf %130, %131 : vector<1x32x128xf32>
    %133 = vector.shape_cast %132 : vector<1x32x128xf32> to vector<1x1x32x128xf32>
    %c0_48 = arith.constant 0 : index
    %c1_49 = arith.constant 1 : index
    %134 = arith.index_cast %93 : i32 to index
    %c0_50 = arith.constant 0 : index
    %135 = vector.load %arg4[%c0_48, %c1_49, %134, %c0_50] : memref<1x2x128x128xf32, #tpu.memory_space<vmem>>, vector<1x1x32x128xf32>
    tpu.vector_store %arg4[%c0_48, %c1_49, %134, %c0_50], %133 {strides = array<i32>} : memref<1x2x128x128xf32, #tpu.memory_space<vmem>>, vector<1x1x32x128xf32>,
    %c3_i32 = arith.constant 3 : i32
    %c32_i32_51 = arith.constant 32 : i32
    %136 = arith.muli %c3_i32, %c32_i32_51 : i32
    %137 = tpu.assume_multiple %136, 32 : i32
    %c0_52 = arith.constant 0 : index
    %138 = arith.index_cast %137 : i32 to index
    %c0_53 = arith.constant 0 : index
    %139 = vector.load %arg3[%c0_52, %138, %c0_53] : memref<1x129x129xf32, #tpu.memory_space<vmem>>, vector<1x33x129xf32>
    %140 = vector.extract_strided_slice %139 {offsets = [0, 0, 0], sizes = [1, 32, 128], strides = [1, 1, 1]} : vector<1x33x129xf32> to vector<1x32x128xf32>
    %141 = vector.extract_strided_slice %139 {offsets = [0, 0, 1], sizes = [1, 32, 128], strides = [1, 1, 1]} : vector<1x33x129xf32> to vector<1x32x128xf32>
    %142 = vector.extract_strided_slice %139 {offsets = [0, 1, 0], sizes = [1, 32, 128], strides = [1, 1, 1]} : vector<1x33x129xf32> to vector<1x32x128xf32>
    %143 = vector.extract_strided_slice %139 {offsets = [0, 1, 1], sizes = [1, 32, 128], strides = [1, 1, 1]} : vector<1x33x129xf32> to vector<1x32x128xf32>
    %cst_54 = arith.constant 1.000000e-01 : f32
    %144 = vector.broadcast %cst_54 : f32 to vector<1x32x128xf32>
    %145 = arith.mulf %144, %140 : vector<1x32x128xf32>
    %cst_55 = arith.constant -2.000000e+00 : f32
    %146 = vector.broadcast %cst_55 : f32 to vector<1x32x128xf32>
    %147 = arith.mulf %146, %141 : vector<1x32x128xf32>
    %148 = arith.addf %145, %147 : vector<1x32x128xf32>
    %cst_56 = arith.constant 1.000000e+00 : f32
    %149 = vector.broadcast %cst_56 : f32 to vector<1x32x128xf32>
    %150 = arith.mulf %149, %142 : vector<1x32x128xf32>
    %151 = arith.addf %148, %150 : vector<1x32x128xf32>
    %cst_57 = arith.constant 1.000000e-01 : f32
    %152 = vector.broadcast %cst_57 : f32 to vector<1x32x128xf32>
    %153 = arith.mulf %152, %143 : vector<1x32x128xf32>
    %154 = arith.addf %151, %153 : vector<1x32x128xf32>
    %155 = vector.broadcast %0 : f32 to vector<1x32x128xf32>
    %156 = arith.mulf %154, %155 : vector<1x32x128xf32>
    %157 = vector.broadcast %2 : f32 to vector<1x32x128xf32>
    %158 = arith.addf %156, %157 : vector<1x32x128xf32>
    %159 = vector.shape_cast %158 : vector<1x32x128xf32> to vector<1x1x32x128xf32>
    %c0_58 = arith.constant 0 : index
    %c0_59 = arith.constant 0 : index
    %160 = arith.index_cast %137 : i32 to index
    %c0_60 = arith.constant 0 : index
    %161 = vector.load %arg4[%c0_58, %c0_59, %160, %c0_60] : memref<1x2x128x128xf32, #tpu.memory_space<vmem>>, vector<1x1x32x128xf32>
    tpu.vector_store %arg4[%c0_58, %c0_59, %160, %c0_60], %159 {strides = array<i32>} : memref<1x2x128x128xf32, #tpu.memory_space<vmem>>, vector<1x1x32x128xf32>,
    %cst_61 = arith.constant 1.000000e-01 : f32
    %162 = vector.broadcast %cst_61 : f32 to vector<1x32x128xf32>
    %163 = arith.mulf %162, %140 : vector<1x32x128xf32>
    %cst_62 = arith.constant 2.000000e+00 : f32
    %164 = vector.broadcast %cst_62 : f32 to vector<1x32x128xf32>
    %165 = arith.mulf %164, %141 : vector<1x32x128xf32>
    %166 = arith.addf %163, %165 : vector<1x32x128xf32>
    %cst_63 = arith.constant -1.000000e+00 : f32
    %167 = vector.broadcast %cst_63 : f32 to vector<1x32x128xf32>
    %168 = arith.mulf %167, %142 : vector<1x32x128xf32>
    %169 = arith.addf %166, %168 : vector<1x32x128xf32>
    %cst_64 = arith.constant 1.000000e-01 : f32
    %170 = vector.broadcast %cst_64 : f32 to vector<1x32x128xf32>
    %171 = arith.mulf %170, %143 : vector<1x32x128xf32>
    %172 = arith.addf %169, %171 : vector<1x32x128xf32>
    %173 = vector.broadcast %1 : f32 to vector<1x32x128xf32>
    %174 = arith.mulf %172, %173 : vector<1x32x128xf32>
    %175 = vector.broadcast %3 : f32 to vector<1x32x128xf32>
    %176 = arith.addf %174, %175 : vector<1x32x128xf32>
    %177 = vector.shape_cast %176 : vector<1x32x128xf32> to vector<1x1x32x128xf32>
    %c0_65 = arith.constant 0 : index
    %c1_66 = arith.constant 1 : index
    %178 = arith.index_cast %137 : i32 to index
    %c0_67 = arith.constant 0 : index
    %179 = vector.load %arg4[%c0_65, %c1_66, %178, %c0_67] : memref<1x2x128x128xf32, #tpu.memory_space<vmem>>, vector<1x1x32x128xf32>
    tpu.vector_store %arg4[%c0_65, %c1_66, %178, %c0_67], %177 {strides = array<i32>} : memref<1x2x128x128xf32, #tpu.memory_space<vmem>>, vector<1x1x32x128xf32>,
    %c4_i32 = arith.constant 4 : i32
    return
  }
  func.func @transform_0(%arg0: i32) -> i32 {
    %c0_i32 = arith.constant 0 : i32
    %c0_i32_0 = arith.constant 0 : i32
    return %c0_i32 : i32
  }
  func.func @transform_1(%arg0: i32) -> i32 {
    %c0_i32 = arith.constant 0 : i32
    %c0_i32_0 = arith.constant 0 : i32
    return %c0_i32 : i32
  }
  func.func @transform_2(%arg0: i32) -> (i32, i32, i32) {
    %c0_i32 = arith.constant 0 : i32
    %c0_i32_0 = arith.constant 0 : i32
    %c0_i32_1 = arith.constant 0 : i32
    return %arg0, %c0_i32, %c0_i32_0 : i32, i32, i32
  }
  func.func @transform_3(%arg0: i32) -> (i32, i32, i32, i32) {
    %c0_i32 = arith.constant 0 : i32
    %c0_i32_0 = arith.constant 0 : i32
    %c0_i32_1 = arith.constant 0 : i32
    %c0_i32_2 = arith.constant 0 : i32
    return %arg0, %c0_i32, %c0_i32_0, %c0_i32_1 : i32, i32, i32, i32
  }
}

</mosaic_0001>

<llo_original>
// kernel: custom_conv_bn_forward.2
$region0: #{custom_conv_bn_forward.2}
  #allocation0 [shape = 'u32[]', space=smem, size = 0x4, offset = 0x4, fixed_abs, tag = 'smem constant byte address 0x4 - core index']
  #allocation1 [shape = 'u32[144,128]{1,0:T(1,128)}', space=vmem, size = 0x12000, scoped, tag = 'internal scratch']
  %s0 = inlined_call_operand.vmem [shape: f32[2,129,129], index: 0, kind: input, shape index: {}]
  %s1 = inlined_call_operand.vmem [shape: f32[2,4,128], index: 1, kind: output, shape index: {}]
  %s2 = sld [smem:[#allocation0]]
  $region37: #{custom_conv_bn_forward.2} parent=0
    _
  %s4 = ssub.s32 1, %s2
  %s5 = scalar_select 0, %s4, %s2
  loop: start=0, step=1, limit=4
  $region2: #{custom_conv_bn_forward.2} parent=0 // loop_pre_header
    _
  $region3: #{custom_conv_bn_forward.2} parent=0 // loop_header
    %s7 = sphi 0, %s11
    %p8 = scmp.ge.s32.totalorder %s7, 4
    %s17 = sphi 0, %s19
    %s20 = sphi 0, %s17
    %s21 = sphi 0, %s20
    %s37 = sphi 0, %s21
    %s43 = sphi 0, %s45
    %s46 = sphi 0, %s43
    %s47 = sphi 0, %s46
    %s63 = sphi 0, %s47
  $region4: #{custom_conv_bn_forward.2} parent=0 // loop_header_branch
    %10 = sbr.rel (%p8) target = $region8
  $region5: #{custom_conv_bn_forward.2} parent=0 // loop_body
    %s12 = ssub.s32 %s7, 1
    %s13 = ssub.s32 %s7, 2
    %s14 = sadd.s32 %s7, 1
    %s15 = ssub.s32 %s7, %s14
    %p16 = scmp.eq.s32.totalorder %s15, 0
    %s18 = sadd.s32 %s17, 1
    %s19 = scalar_select %p16, %s17, %s18
    %p22 = pneg %p16
    %p23 = scmp.eq.s32.totalorder %s7, 1
    %p24 = por %p22, %p23
    %p25 = scmp.ne.s32.totalorder %s17, %s20
    %p26 = scmp.eq.s32.totalorder %s7, 0
    %p27 = por %p25, %p26
    %p28 = scmp.ne.s32.totalorder %s17, %s20
    %p29 = scmp.eq.s32.totalorder %s12, 1
    %p30 = por %p28, %p29
    %p31 = scmp.ne.s32.totalorder %s20, %s21
    %p32 = scmp.eq.s32.totalorder %s12, 0
    %p33 = por %p31, %p32
    %p34 = scmp.ne.s32.totalorder %s20, %s21
    %p35 = scmp.eq.s32.totalorder %s13, 1
    %p36 = por %p34, %p35
    %p38 = scmp.ne.s32.totalorder %s21, %s37
    %p39 = scmp.eq.s32.totalorder %s13, 0
    %p40 = por %p38, %p39
    %s41 = ssub.s32 %s7, %s14
    %p42 = scmp.eq.s32.totalorder %s41, 0
    %s44 = sadd.s32 %s43, 1
    %s45 = scalar_select %p42, %s43, %s44
    %p48 = pneg %p42
    %p49 = scmp.eq.s32.totalorder %s7, 1
    %p50 = por %p48, %p49
    %p51 = scmp.ne.s32.totalorder %s43, %s46
    %p52 = scmp.eq.s32.totalorder %s7, 0
    %p53 = por %p51, %p52
    %p54 = scmp.ne.s32.totalorder %s43, %s46
    %p55 = scmp.eq.s32.totalorder %s12, 1
    %p56 = por %p54, %p55
    %p57 = scmp.ne.s32.totalorder %s46, %s47
    %p58 = scmp.eq.s32.totalorder %s12, 0
    %p59 = por %p57, %p58
    %p60 = scmp.ne.s32.totalorder %s46, %s47
    %p61 = scmp.eq.s32.totalorder %s13, 1
    %p62 = por %p60, %p61
    %p64 = scmp.ne.s32.totalorder %s47, %s63
    %p65 = scmp.eq.s32.totalorder %s13, 0
    %p66 = por %p64, %p65
    %p67 = scmp.le.s32.totalorder 1, %s7
    %p68 = scmp.lt.s32.totalorder %s7, 3
    %p69 = pnand %p67, %p68
    %p70 = pneg %p69
    // Predicated region
    $region9: #{custom_conv_bn_forward.2} parent=5 // pred_check
      _
    $region10: #{custom_conv_bn_forward.2} parent=5 // pred_check_branch
      %72 = sbr.rel (%p69) target = $region12
    $region11: #{custom_conv_bn_forward.2} parent=5 // pred_region
      %s73 = ssub.s32 %s7, 1
    $region12: #{custom_conv_bn_forward.2} parent=5 // pred_fallthru
      _
    %p74 = scmp.lt.s32.totalorder %s7, 2
    // Predicated region
    $region13: #{custom_conv_bn_forward.2} parent=5 // pred_check
      %p75 = pneg %p74
    $region14: #{custom_conv_bn_forward.2} parent=5 // pred_check_branch
      %77 = sbr.rel (%p75) target = $region16
    $region15: #{custom_conv_bn_forward.2} parent=5 // pred_region
      // Predicated region
      $region17: #{custom_conv_bn_forward.2} parent=15 // pred_check
        %p78 = pneg %p27
      $region18: #{custom_conv_bn_forward.2} parent=15 // pred_check_branch
        %80 = sbr.rel (%p78) target = $region20
      $region19: #{custom_conv_bn_forward.2} parent=15 // pred_region
        %p81 = scmp.lt.s32.totalorder %s7, 1
        %s82 = scalar_select %p81, %s7, 1
        %s83 = smul.addr %s82, 34
        %s84 = smul.addr %s83, 8
        %s85 = scalar_lea.vmem %s0, %s84
      $region20: #{custom_conv_bn_forward.2} parent=15 // pred_fallthru
        _
    $region16: #{custom_conv_bn_forward.2} parent=5 // pred_fallthru
      _
    %p86 = scmp.le.s32.totalorder 1, %s7
    %p87 = scmp.lt.s32.totalorder %s7, 3
    %p88 = pnand %p86, %p87
    %p89 = pneg %p88
    // Predicated region
    $region21: #{custom_conv_bn_forward.2} parent=5 // pred_check
      _
    $region22: #{custom_conv_bn_forward.2} parent=5 // pred_check_branch
      %91 = sbr.rel (%p88) target = $region24
    $region23: #{custom_conv_bn_forward.2} parent=5 // pred_region
      %s92 = ssub.s32 %s7, 1
      %p93 = scmp.lt.s32.totalorder %s12, 1
      %s94 = scalar_select %p93, %s12, 1
      %s95 = smul.addr %s94, 34
      %s96 = smul.addr %s95, 8
      %s97 = scalar_lea.vmem %s0, %s96
      %p98 = pneg %p33
      %p99 = pneg %p30
      %p100 = pneg %p59
      %p101 = pneg %p56
      %p102 = scmp.lt.s32.totalorder %s12, 1
      %s103 = scalar_select %p102, %s12, 1
      %s104 = smul.addr %s103, 4
      %s105 = scalar_lea.vmem %s1, %s104
      %p106 = scmp.lt.s32.totalorder %s12, 1
      %s107 = scalar_select %p106, %s12, 1
      %s108 = smul.addr %s107, 34
      %s109 = smul.addr %s108, 8
      %s110 = scalar_lea.vmem %s0, %s109
      %p111 = scmp.lt.s32.totalorder %s12, 1
      %s112 = scalar_select %p111, %s12, 1
      %s113 = smul.addr %s112, 4
      %s114 = scalar_lea.vmem %s1, %s113
      %115 = vst [vmem:[%s114] sm:$0xf] 0.0
      %s116 = smul.u32 0, 2
      %s117 = smul.addr %s116, 8
      %s118 = scalar_lea.vmem %s110, %s117
      %v119 = vld [vmem:[%s118] sm:$0xff]
      %v120 = vld [vmem:[%s118 + $0x8] sm:$0xff]
      %v121 = vld [vmem:[%s118 + $0x10] sm:$0xff]
      %v122 = vld [vmem:[%s118 + $0x18] sm:$0xff]
      %v123 = vld [vmem:[%s118 + $0x20] sm:$0xff]
      %v124 = vld [vmem:[%s118 + $0x28] sm:$0xff]
      %v125 = vld [vmem:[%s118 + $0x30] sm:$0xff]
      %v126 = vld [vmem:[%s118 + $0x38] sm:$0xff]
      %v127 = vld [vmem:[%s118 + $0x40] sm:$0x1]
      %v128 = vld [vmem:[%s118 + $0x48] sm:$0x1]
      %v129 = vmul.f32 %v119, 0.1
      %v130 = vmul.f32 %v121, 0.1
      %v131 = vmul.f32 %v123, 0.1
      %v132 = vmul.f32 %v125, 0.1
      %v133 = vmul.f32 %v119, -2.0
      %v134 = vmul.f32 %v120, -2.0
      %v135 = vmul.f32 %v121, -2.0
      %v136 = vmul.f32 %v122, -2.0
      %v137 = vmul.f32 %v123, -2.0
      %v138 = vmul.f32 %v124, -2.0
      %v139 = vmul.f32 %v125, -2.0
      %v140 = vmul.f32 %v126, -2.0
      %149 = vrot.lane.b32.xlu0 %v133, 127
      %v150 = vpop.permute.xlu0 %149
      %151 = vrot.lane.b32.xlu0 %v134, 127
      %v152 = vpop.permute.xlu0 %151
      %153 = vrot.lane.b32.xlu0 %v135, 127
      %v154 = vpop.permute.xlu0 %153
      %155 = vrot.lane.b32.xlu0 %v136, 127
      %v156 = vpop.permute.xlu0 %155
      %157 = vrot.lane.b32.xlu0 %v137, 127
      %v158 = vpop.permute.xlu0 %157
      %159 = vrot.lane.b32.xlu0 %v138, 127
      %v160 = vpop.permute.xlu0 %159
      %161 = vrot.lane.b32.xlu0 %v139, 127
      %v162 = vpop.permute.xlu0 %161
      %163 = vrot.lane.b32.xlu0 %v140, 127
      %v164 = vpop.permute.xlu0 %163
      %vm165 = vcmask 1039360
      %v166 = vsel %vm165, %v150, %v152
      %v167 = vsel %vm165, %v154, %v156
      %v168 = vsel %vm165, %v158, %v160
      %v169 = vsel %vm165, %v162, %v164
      %v174 = vadd.f32 %v129, %v166
      %v175 = vadd.f32 %v130, %v167
      %v176 = vadd.f32 %v131, %v168
      %v177 = vadd.f32 %v132, %v169
      %vm183 = vcmask 1046528
      %v184 = vrot.slane %v119, 1
      %v185 = vrot.slane %v121, 1
      %v186 = vsel %vm183, %v184, %v185
      %v187 = vrot.slane %v123, 1
      %v188 = vsel %vm183, %v185, %v187
      %v189 = vrot.slane %v125, 1
      %v190 = vsel %vm183, %v187, %v189
      %v191 = vrot.slane %v127, 1
      %v192 = vsel %vm183, %v189, %v191
      %v197 = vadd.f32 %v174, %v186
      %v198 = vadd.f32 %v175, %v188
      %v199 = vadd.f32 %v176, %v190
      %v200 = vadd.f32 %v177, %v192
      %v201 = vmul.f32 %v120, 0.1
      %v202 = vmul.f32 %v122, 0.1
      %v203 = vmul.f32 %v124, 0.1
      %v204 = vmul.f32 %v126, 0.1
      %v205 = vmul.f32 %v127, 0.1
      %v206 = vmul.f32 %v128, 0.1
      %v217 = vrot.slane %v129, 1
      %v218 = vrot.slane %v130, 1
      %v219 = vsel %vm183, %v217, %v218
      %v220 = vrot.slane %v201, 1
      %v221 = vrot.slane %v202, 1
      %v222 = vsel %vm183, %v220, %v221
      %v223 = vrot.slane %v131, 1
      %v224 = vsel %vm183, %v218, %v223
      %v225 = vrot.slane %v203, 1
      %v226 = vsel %vm183, %v221, %v225
      %v227 = vrot.slane %v132, 1
      %v228 = vsel %vm183, %v223, %v227
      %v229 = vrot.slane %v204, 1
      %v230 = vsel %vm183, %v225, %v229
      %v231 = vrot.slane %v205, 1
      %v232 = vsel %vm183, %v227, %v231
      %v233 = vrot.slane %v206, 1
      %v234 = vsel %vm183, %v229, %v233
      %235 = vrot.lane.b32.xlu0 %v219, 127
      %v236 = vpop.permute.xlu0 %235
      %237 = vrot.lane.b32.xlu0 %v222, 127
      %v238 = vpop.permute.xlu0 %237
      %239 = vrot.lane.b32.xlu0 %v224, 127
      %v240 = vpop.permute.xlu0 %239
      %241 = vrot.lane.b32.xlu0 %v226, 127
      %v242 = vpop.permute.xlu0 %241
      %243 = vrot.lane.b32.xlu0 %v228, 127
      %v244 = vpop.permute.xlu0 %243
      %245 = vrot.lane.b32.xlu0 %v230, 127
      %v246 = vpop.permute.xlu0 %245
      %247 = vrot.lane.b32.xlu0 %v232, 127
      %v248 = vpop.permute.xlu0 %247
      %249 = vrot.lane.b32.xlu0 %v234, 127
      %v250 = vpop.permute.xlu0 %249
      %v251 = vsel %vm165, %v236, %v238
      %v252 = vsel %vm165, %v240, %v242
      %v253 = vsel %vm165, %v244, %v246
      %v254 = vsel %vm165, %v248, %v250
      %v259 = vadd.f32 %v197, %v251
      %v260 = vadd.f32 %v198, %v252
      %v261 = vadd.f32 %v199, %v253
      %v262 = vadd.f32 %v200, %v254
      %v263 = vld [vmem:[%s114] sm:$0x1]
      %v264 = vadd.f32 %v259, %v260
      %v265 = vadd.f32 %v264, %v261
      %v266 = vadd.f32 %v265, %v262
      %v267 = vrot.slane %v266, 4
      %v268 = vadd.f32 %v266, %v267
      %v269 = vrot.slane %v268, 2
      %v270 = vadd.f32 %v268, %v269
      %v271 = vrot.slane %v270, 1
      %v272 = vadd.f32 %v270, %v271
      %v273 = vadd.f32 %v263, %v272
      %274 = vst [vmem:[%s114] sm:$0x1] %v273
      %v275 = vld [vmem:[%s114 + $0x1] sm:$0x1]
      %v276 = vmul.f32 %v259, %v259
      %v277 = vmul.f32 %v260, %v260
      %v278 = vmul.f32 %v261, %v261
      %v279 = vmul.f32 %v262, %v262
      %v280 = vadd.f32 %v276, %v277
      %v281 = vadd.f32 %v280, %v278
      %v282 = vadd.f32 %v281, %v279
      %v283 = vrot.slane %v282, 4
      %v284 = vadd.f32 %v282, %v283
      %v285 = vrot.slane %v284, 2
      %v286 = vadd.f32 %v284, %v285
      %v287 = vrot.slane %v286, 1
      %v288 = vadd.f32 %v286, %v287
      %v289 = vadd.f32 %v275, %v288
      %290 = vst [vmem:[%s114 + $0x1] sm:$0x1] %v289
      %v291 = vmul.f32 %v119, 2.0
      %v292 = vmul.f32 %v120, 2.0
      %v293 = vmul.f32 %v121, 2.0
      %v294 = vmul.f32 %v122, 2.0
      %v295 = vmul.f32 %v123, 2.0
      %v296 = vmul.f32 %v124, 2.0
      %v297 = vmul.f32 %v125, 2.0
      %v298 = vmul.f32 %v126, 2.0
      %307 = vrot.lane.b32.xlu0 %v291, 127
      %v308 = vpop.permute.xlu0 %307
      %309 = vrot.lane.b32.xlu0 %v292, 127
      %v310 = vpop.permute.xlu0 %309
      %311 = vrot.lane.b32.xlu0 %v293, 127
      %v312 = vpop.permute.xlu0 %311
      %313 = vrot.lane.b32.xlu0 %v294, 127
      %v314 = vpop.permute.xlu0 %313
      %315 = vrot.lane.b32.xlu0 %v295, 127
      %v316 = vpop.permute.xlu0 %315
      %317 = vrot.lane.b32.xlu0 %v296, 127
      %v318 = vpop.permute.xlu0 %317
      %319 = vrot.lane.b32.xlu0 %v297, 127
      %v320 = vpop.permute.xlu0 %319
      %321 = vrot.lane.b32.xlu0 %v298, 127
      %v322 = vpop.permute.xlu0 %321
      %v323 = vsel %vm165, %v308, %v310
      %v324 = vsel %vm165, %v312, %v314
      %v325 = vsel %vm165, %v316, %v318
      %v326 = vsel %vm165, %v320, %v322
      %v331 = vadd.f32 %v129, %v323
      %v332 = vadd.f32 %v130, %v324
      %v333 = vadd.f32 %v131, %v325
      %v334 = vadd.f32 %v132, %v326
      %v335 = vmul.f32 %v119, -1.0
      %v336 = vmul.f32 %v121, -1.0
      %v337 = vmul.f32 %v123, -1.0
      %v338 = vmul.f32 %v125, -1.0
      %v339 = vmul.f32 %v127, -1.0
      %v345 = vrot.slane %v335, 1
      %v346 = vrot.slane %v336, 1
      %v347 = vsel %vm183, %v345, %v346
      %v348 = vrot.slane %v337, 1
      %v349 = vsel %vm183, %v346, %v348
      %v350 = vrot.slane %v338, 1
      %v351 = vsel %vm183, %v348, %v350
      %v352 = vrot.slane %v339, 1
      %v353 = vsel %vm183, %v350, %v352
      %v358 = vadd.f32 %v331, %v347
      %v359 = vadd.f32 %v332, %v349
      %v360 = vadd.f32 %v333, %v351
      %v361 = vadd.f32 %v334, %v353
      %v362 = vadd.f32 %v358, %v251
      %v363 = vadd.f32 %v359, %v252
      %v364 = vadd.f32 %v360, %v253
      %v365 = vadd.f32 %v361, %v254
      %v366 = vld [vmem:[%s114 + $0x2] sm:$0x1]
      %v367 = vadd.f32 %v362, %v363
      %v368 = vadd.f32 %v367, %v364
      %v369 = vadd.f32 %v368, %v365
      %v370 = vrot.slane %v369, 4
      %v371 = vadd.f32 %v369, %v370
      %v372 = vrot.slane %v371, 2
      %v373 = vadd.f32 %v371, %v372
      %v374 = vrot.slane %v373, 1
      %v375 = vadd.f32 %v373, %v374
      %v376 = vadd.f32 %v366, %v375
      %377 = vst [vmem:[%s114 + $0x2] sm:$0x1] %v376
      %v378 = vld [vmem:[%s114 + $0x3] sm:$0x1]
      %v379 = vmul.f32 %v362, %v362
      %v380 = vmul.f32 %v363, %v363
      %v381 = vmul.f32 %v364, %v364
      %v382 = vmul.f32 %v365, %v365
      %v383 = vadd.f32 %v379, %v380
      %v384 = vadd.f32 %v383, %v381
      %v385 = vadd.f32 %v384, %v382
      %v386 = vrot.slane %v385, 4
      %v387 = vadd.f32 %v385, %v386
      %v388 = vrot.slane %v387, 2
      %v389 = vadd.f32 %v387, %v388
      %v390 = vrot.slane %v389, 1
      %v391 = vadd.f32 %v389, %v390
      %v392 = vadd.f32 %v378, %v391
      %393 = vst [vmem:[%s114 + $0x3] sm:$0x1] %v392
      %s394 = smul.u32 4, 2
      %s395 = smul.addr %s394, 8
      %s396 = scalar_lea.vmem %s110, %s395
      %v397 = vld [vmem:[%s396] sm:$0xff]
      %v398 = vld [vmem:[%s396 + $0x8] sm:$0xff]
      %v399 = vld [vmem:[%s396 + $0x10] sm:$0xff]
      %v400 = vld [vmem:[%s396 + $0x18] sm:$0xff]
      %v401 = vld [vmem:[%s396 + $0x20] sm:$0xff]
      %v402 = vld [vmem:[%s396 + $0x28] sm:$0xff]
      %v403 = vld [vmem:[%s396 + $0x30] sm:$0xff]
      %v404 = vld [vmem:[%s396 + $0x38] sm:$0xff]
      %v405 = vld [vmem:[%s396 + $0x40] sm:$0x1]
      %v406 = vld [vmem:[%s396 + $0x48] sm:$0x1]
      %v407 = vmul.f32 %v397, 0.1
      %v408 = vmul.f32 %v399, 0.1
      %v409 = vmul.f32 %v401, 0.1
      %v410 = vmul.f32 %v403, 0.1
      %v411 = vmul.f32 %v397, -2.0
      %v412 = vmul.f32 %v398, -2.0
      %v413 = vmul.f32 %v399, -2.0
      %v414 = vmul.f32 %v400, -2.0
      %v415 = vmul.f32 %v401, -2.0
      %v416 = vmul.f32 %v402, -2.0
      %v417 = vmul.f32 %v403, -2.0
      %v418 = vmul.f32 %v404, -2.0
      %427 = vrot.lane.b32.xlu0 %v411, 127
      %v428 = vpop.permute.xlu0 %427
      %429 = vrot.lane.b32.xlu0 %v412, 127
      %v430 = vpop.permute.xlu0 %429
      %431 = vrot.lane.b32.xlu0 %v413, 127
      %v432 = vpop.permute.xlu0 %431
      %433 = vrot.lane.b32.xlu0 %v414, 127
      %v434 = vpop.permute.xlu0 %433
      %435 = vrot.lane.b32.xlu0 %v415, 127
      %v436 = vpop.permute.xlu0 %435
      %437 = vrot.lane.b32.xlu0 %v416, 127
      %v438 = vpop.permute.xlu0 %437
      %439 = vrot.lane.b32.xlu0 %v417, 127
      %v440 = vpop.permute.xlu0 %439
      %441 = vrot.lane.b32.xlu0 %v418, 127
      %v442 = vpop.permute.xlu0 %441
      %v443 = vsel %vm165, %v428, %v430
      %v444 = vsel %vm165, %v432, %v434
      %v445 = vsel %vm165, %v436, %v438
      %v446 = vsel %vm165, %v440, %v442
      %v451 = vadd.f32 %v407, %v443
      %v452 = vadd.f32 %v408, %v444
      %v453 = vadd.f32 %v409, %v445
      %v454 = vadd.f32 %v410, %v446
      %v460 = vrot.slane %v397, 1
      %v461 = vrot.slane %v399, 1
      %v462 = vsel %vm183, %v460, %v461
      %v463 = vrot.slane %v401, 1
      %v464 = vsel %vm183, %v461, %v463
      %v465 = vrot.slane %v403, 1
      %v466 = vsel %vm183, %v463, %v465
      %v467 = vrot.slane %v405, 1
      %v468 = vsel %vm183, %v465, %v467
      %v473 = vadd.f32 %v451, %v462
      %v474 = vadd.f32 %v452, %v464
      %v475 = vadd.f32 %v453, %v466
      %v476 = vadd.f32 %v454, %v468
      %v477 = vmul.f32 %v398, 0.1
      %v478 = vmul.f32 %v400, 0.1
      %v479 = vmul.f32 %v402, 0.1
      %v480 = vmul.f32 %v404, 0.1
      %v481 = vmul.f32 %v405, 0.1
      %v482 = vmul.f32 %v406, 0.1
      %v493 = vrot.slane %v407, 1
      %v494 = vrot.slane %v408, 1
      %v495 = vsel %vm183, %v493, %v494
      %v496 = vrot.slane %v477, 1
      %v497 = vrot.slane %v478, 1
      %v498 = vsel %vm183, %v496, %v497
      %v499 = vrot.slane %v409, 1
      %v500 = vsel %vm183, %v494, %v499
      %v501 = vrot.slane %v479, 1
      %v502 = vsel %vm183, %v497, %v501
      %v503 = vrot.slane %v410, 1
      %v504 = vsel %vm183, %v499, %v503
      %v505 = vrot.slane %v480, 1
      %v506 = vsel %vm183, %v501, %v505
      %v507 = vrot.slane %v481, 1
      %v508 = vsel %vm183, %v503, %v507
      %v509 = vrot.slane %v482, 1
      %v510 = vsel %vm183, %v505, %v509
      %511 = vrot.lane.b32.xlu0 %v495, 127
      %v512 = vpop.permute.xlu0 %511
      %513 = vrot.lane.b32.xlu0 %v498, 127
      %v514 = vpop.permute.xlu0 %513
      %515 = vrot.lane.b32.xlu0 %v500, 127
      %v516 = vpop.permute.xlu0 %515
      %517 = vrot.lane.b32.xlu0 %v502, 127
      %v518 = vpop.permute.xlu0 %517
      %519 = vrot.lane.b32.xlu0 %v504, 127
      %v520 = vpop.permute.xlu0 %519
      %521 = vrot.lane.b32.xlu0 %v506, 127
      %v522 = vpop.permute.xlu0 %521
      %523 = vrot.lane.b32.xlu0 %v508, 127
      %v524 = vpop.permute.xlu0 %523
      %525 = vrot.lane.b32.xlu0 %v510, 127
      %v526 = vpop.permute.xlu0 %525
      %v527 = vsel %vm165, %v512, %v514
      %v528 = vsel %vm165, %v516, %v518
      %v529 = vsel %vm165, %v520, %v522
      %v530 = vsel %vm165, %v524, %v526
      %v535 = vadd.f32 %v473, %v527
      %v536 = vadd.f32 %v474, %v528
      %v537 = vadd.f32 %v475, %v529
      %v538 = vadd.f32 %v476, %v530
      %v539 = vld [vmem:[%s114] sm:$0x1]
      %v540 = vadd.f32 %v535, %v536
      %v541 = vadd.f32 %v540, %v537
      %v542 = vadd.f32 %v541, %v538
      %v543 = vrot.slane %v542, 4
      %v544 = vadd.f32 %v542, %v543
      %v545 = vrot.slane %v544, 2
      %v546 = vadd.f32 %v544, %v545
      %v547 = vrot.slane %v546, 1
      %v548 = vadd.f32 %v546, %v547
      %v549 = vadd.f32 %v539, %v548
      %550 = vst [vmem:[%s114] sm:$0x1] %v549
      %v551 = vld [vmem:[%s114 + $0x1] sm:$0x1]
      %v552 = vmul.f32 %v535, %v535
      %v553 = vmul.f32 %v536, %v536
      %v554 = vmul.f32 %v537, %v537
      %v555 = vmul.f32 %v538, %v538
      %v556 = vadd.f32 %v552, %v553
      %v557 = vadd.f32 %v556, %v554
      %v558 = vadd.f32 %v557, %v555
      %v559 = vrot.slane %v558, 4
      %v560 = vadd.f32 %v558, %v559
      %v561 = vrot.slane %v560, 2
      %v562 = vadd.f32 %v560, %v561
      %v563 = vrot.slane %v562, 1
      %v564 = vadd.f32 %v562, %v563
      %v565 = vadd.f32 %v551, %v564
      %566 = vst [vmem:[%s114 + $0x1] sm:$0x1] %v565
      %v567 = vmul.f32 %v397, 2.0
      %v568 = vmul.f32 %v398, 2.0
      %v569 = vmul.f32 %v399, 2.0
      %v570 = vmul.f32 %v400, 2.0
      %v571 = vmul.f32 %v401, 2.0
      %v572 = vmul.f32 %v402, 2.0
      %v573 = vmul.f32 %v403, 2.0
      %v574 = vmul.f32 %v404, 2.0
      %583 = vrot.lane.b32.xlu0 %v567, 127
      %v584 = vpop.permute.xlu0 %583
      %585 = vrot.lane.b32.xlu0 %v568, 127
      %v586 = vpop.permute.xlu0 %585
      %587 = vrot.lane.b32.xlu0 %v569, 127
      %v588 = vpop.permute.xlu0 %587
      %589 = vrot.lane.b32.xlu0 %v570, 127
      %v590 = vpop.permute.xlu0 %589
      %591 = vrot.lane.b32.xlu0 %v571, 127
      %v592 = vpop.permute.xlu0 %591
      %593 = vrot.lane.b32.xlu0 %v572, 127
      %v594 = vpop.permute.xlu0 %593
      %595 = vrot.lane.b32.xlu0 %v573, 127
      %v596 = vpop.permute.xlu0 %595
      %597 = vrot.lane.b32.xlu0 %v574, 127
      %v598 = vpop.permute.xlu0 %597
      %v599 = vsel %vm165, %v584, %v586
      %v600 = vsel %vm165, %v588, %v590
      %v601 = vsel %vm165, %v592, %v594
      %v602 = vsel %vm165, %v596, %v598
      %v607 = vadd.f32 %v407, %v599
      %v608 = vadd.f32 %v408, %v600
      %v609 = vadd.f32 %v409, %v601
      %v610 = vadd.f32 %v410, %v602
      %v611 = vmul.f32 %v397, -1.0
      %v612 = vmul.f32 %v399, -1.0
      %v613 = vmul.f32 %v401, -1.0
      %v614 = vmul.f32 %v403, -1.0
      %v615 = vmul.f32 %v405, -1.0
      %v621 = vrot.slane %v611, 1
      %v622 = vrot.slane %v612, 1
      %v623 = vsel %vm183, %v621, %v622
      %v624 = vrot.slane %v613, 1
      %v625 = vsel %vm183, %v622, %v624
      %v626 = vrot.slane %v614, 1
      %v627 = vsel %vm183, %v624, %v626
      %v628 = vrot.slane %v615, 1
      %v629 = vsel %vm183, %v626, %v628
      %v634 = vadd.f32 %v607, %v623
      %v635 = vadd.f32 %v608, %v625
      %v636 = vadd.f32 %v609, %v627
      %v637 = vadd.f32 %v610, %v629
      %v638 = vadd.f32 %v634, %v527
      %v639 = vadd.f32 %v635, %v528
      %v640 = vadd.f32 %v636, %v529
      %v641 = vadd.f32 %v637, %v530
      %v642 = vld [vmem:[%s114 + $0x2] sm:$0x1]
      %v643 = vadd.f32 %v638, %v639
      %v644 = vadd.f32 %v643, %v640
      %v645 = vadd.f32 %v644, %v641
      %v646 = vrot.slane %v645, 4
      %v647 = vadd.f32 %v645, %v646
      %v648 = vrot.slane %v647, 2
      %v649 = vadd.f32 %v647, %v648
      %v650 = vrot.slane %v649, 1
      %v651 = vadd.f32 %v649, %v650
      %v652 = vadd.f32 %v642, %v651
      %653 = vst [vmem:[%s114 + $0x2] sm:$0x1] %v652
      %v654 = vld [vmem:[%s114 + $0x3] sm:$0x1]
      %v655 = vmul.f32 %v638, %v638
      %v656 = vmul.f32 %v639, %v639
      %v657 = vmul.f32 %v640, %v640
      %v658 = vmul.f32 %v641, %v641
      %v659 = vadd.f32 %v655, %v656
      %v660 = vadd.f32 %v659, %v657
      %v661 = vadd.f32 %v660, %v658
      %v662 = vrot.slane %v661, 4
      %v663 = vadd.f32 %v661, %v662
      %v664 = vrot.slane %v663, 2
      %v665 = vadd.f32 %v663, %v664
      %v666 = vrot.slane %v665, 1
      %v667 = vadd.f32 %v665, %v666
      %v668 = vadd.f32 %v654, %v667
      %669 = vst [vmem:[%s114 + $0x3] sm:$0x1] %v668
      %s670 = smul.u32 8, 2
      %s671 = smul.addr %s670, 8
      %s672 = scalar_lea.vmem %s110, %s671
      %v673 = vld [vmem:[%s672] sm:$0xff]
      %v674 = vld [vmem:[%s672 + $0x8] sm:$0xff]
      %v675 = vld [vmem:[%s672 + $0x10] sm:$0xff]
      %v676 = vld [vmem:[%s672 + $0x18] sm:$0xff]
      %v677 = vld [vmem:[%s672 + $0x20] sm:$0xff]
      %v678 = vld [vmem:[%s672 + $0x28] sm:$0xff]
      %v679 = vld [vmem:[%s672 + $0x30] sm:$0xff]
      %v680 = vld [vmem:[%s672 + $0x38] sm:$0xff]
      %v681 = vld [vmem:[%s672 + $0x40] sm:$0x1]
      %v682 = vld [vmem:[%s672 + $0x48] sm:$0x1]
      %v683 = vmul.f32 %v673, 0.1
      %v684 = vmul.f32 %v675, 0.1
      %v685 = vmul.f32 %v677, 0.1
      %v686 = vmul.f32 %v679, 0.1
      %v687 = vmul.f32 %v673, -2.0
      %v688 = vmul.f32 %v674, -2.0
      %v689 = vmul.f32 %v675, -2.0
      %v690 = vmul.f32 %v676, -2.0
      %v691 = vmul.f32 %v677, -2.0
      %v692 = vmul.f32 %v678, -2.0
      %v693 = vmul.f32 %v679, -2.0
      %v694 = vmul.f32 %v680, -2.0
      %703 = vrot.lane.b32.xlu0 %v687, 127
      %v704 = vpop.permute.xlu0 %703
      %705 = vrot.lane.b32.xlu0 %v688, 127
      %v706 = vpop.permute.xlu0 %705
      %707 = vrot.lane.b32.xlu0 %v689, 127
      %v708 = vpop.permute.xlu0 %707
      %709 = vrot.lane.b32.xlu0 %v690, 127
      %v710 = vpop.permute.xlu0 %709
      %711 = vrot.lane.b32.xlu0 %v691, 127
      %v712 = vpop.permute.xlu0 %711
      %713 = vrot.lane.b32.xlu0 %v692, 127
      %v714 = vpop.permute.xlu0 %713
      %715 = vrot.lane.b32.xlu0 %v693, 127
      %v716 = vpop.permute.xlu0 %715
      %717 = vrot.lane.b32.xlu0 %v694, 127
      %v718 = vpop.permute.xlu0 %717
      %v719 = vsel %vm165, %v704, %v706
      %v720 = vsel %vm165, %v708, %v710
      %v721 = vsel %vm165, %v712, %v714
      %v722 = vsel %vm165, %v716, %v718
      %v727 = vadd.f32 %v683, %v719
      %v728 = vadd.f32 %v684, %v720
      %v729 = vadd.f32 %v685, %v721
      %v730 = vadd.f32 %v686, %v722
      %v736 = vrot.slane %v673, 1
      %v737 = vrot.slane %v675, 1
      %v738 = vsel %vm183, %v736, %v737
      %v739 = vrot.slane %v677, 1
      %v740 = vsel %vm183, %v737, %v739
      %v741 = vrot.slane %v679, 1
      %v742 = vsel %vm183, %v739, %v741
      %v743 = vrot.slane %v681, 1
      %v744 = vsel %vm183, %v741, %v743
      %v749 = vadd.f32 %v727, %v738
      %v750 = vadd.f32 %v728, %v740
      %v751 = vadd.f32 %v729, %v742
      %v752 = vadd.f32 %v730, %v744
      %v753 = vmul.f32 %v674, 0.1
      %v754 = vmul.f32 %v676, 0.1
      %v755 = vmul.f32 %v678, 0.1
      %v756 = vmul.f32 %v680, 0.1
      %v757 = vmul.f32 %v681, 0.1
      %v758 = vmul.f32 %v682, 0.1
      %v769 = vrot.slane %v683, 1
      %v770 = vrot.slane %v684, 1
      %v771 = vsel %vm183, %v769, %v770
      %v772 = vrot.slane %v753, 1
      %v773 = vrot.slane %v754, 1
      %v774 = vsel %vm183, %v772, %v773
      %v775 = vrot.slane %v685, 1
      %v776 = vsel %vm183, %v770, %v775
      %v777 = vrot.slane %v755, 1
      %v778 = vsel %vm183, %v773, %v777
      %v779 = vrot.slane %v686, 1
      %v780 = vsel %vm183, %v775, %v779
      %v781 = vrot.slane %v756, 1
      %v782 = vsel %vm183, %v777, %v781
      %v783 = vrot.slane %v757, 1
      %v784 = vsel %vm183, %v779, %v783
      %v785 = vrot.slane %v758, 1
      %v786 = vsel %vm183, %v781, %v785
      %787 = vrot.lane.b32.xlu0 %v771, 127
      %v788 = vpop.permute.xlu0 %787
      %789 = vrot.lane.b32.xlu0 %v774, 127
      %v790 = vpop.permute.xlu0 %789
      %791 = vrot.lane.b32.xlu0 %v776, 127
      %v792 = vpop.permute.xlu0 %791
      %793 = vrot.lane.b32.xlu0 %v778, 127
      %v794 = vpop.permute.xlu0 %793
      %795 = vrot.lane.b32.xlu0 %v780, 127
      %v796 = vpop.permute.xlu0 %795
      %797 = vrot.lane.b32.xlu0 %v782, 127
      %v798 = vpop.permute.xlu0 %797
      %799 = vrot.lane.b32.xlu0 %v784, 127
      %v800 = vpop.permute.xlu0 %799
      %801 = vrot.lane.b32.xlu0 %v786, 127
      %v802 = vpop.permute.xlu0 %801
      %v803 = vsel %vm165, %v788, %v790
      %v804 = vsel %vm165, %v792, %v794
      %v805 = vsel %vm165, %v796, %v798
      %v806 = vsel %vm165, %v800, %v802
      %v811 = vadd.f32 %v749, %v803
      %v812 = vadd.f32 %v750, %v804
      %v813 = vadd.f32 %v751, %v805
      %v814 = vadd.f32 %v752, %v806
      %v815 = vld [vmem:[%s114] sm:$0x1]
      %v816 = vadd.f32 %v811, %v812
      %v817 = vadd.f32 %v816, %v813
      %v818 = vadd.f32 %v817, %v814
      %v819 = vrot.slane %v818, 4
      %v820 = vadd.f32 %v818, %v819
      %v821 = vrot.slane %v820, 2
      %v822 = vadd.f32 %v820, %v821
      %v823 = vrot.slane %v822, 1
      %v824 = vadd.f32 %v822, %v823
      %v825 = vadd.f32 %v815, %v824
      %826 = vst [vmem:[%s114] sm:$0x1] %v825
      %v827 = vld [vmem:[%s114 + $0x1] sm:$0x1]
      %v828 = vmul.f32 %v811, %v811
      %v829 = vmul.f32 %v812, %v812
      %v830 = vmul.f32 %v813, %v813
      %v831 = vmul.f32 %v814, %v814
      %v832 = vadd.f32 %v828, %v829
      %v833 = vadd.f32 %v832, %v830
      %v834 = vadd.f32 %v833, %v831
      %v835 = vrot.slane %v834, 4
      %v836 = vadd.f32 %v834, %v835
      %v837 = vrot.slane %v836, 2
      %v838 = vadd.f32 %v836, %v837
      %v839 = vrot.slane %v838, 1
      %v840 = vadd.f32 %v838, %v839
      %v841 = vadd.f32 %v827, %v840
      %842 = vst [vmem:[%s114 + $0x1] sm:$0x1] %v841
      %v843 = vmul.f32 %v673, 2.0
      %v844 = vmul.f32 %v674, 2.0
      %v845 = vmul.f32 %v675, 2.0
      %v846 = vmul.f32 %v676, 2.0
      %v847 = vmul.f32 %v677, 2.0
      %v848 = vmul.f32 %v678, 2.0
      %v849 = vmul.f32 %v679, 2.0
      %v850 = vmul.f32 %v680, 2.0
      %859 = vrot.lane.b32.xlu0 %v843, 127
      %v860 = vpop.permute.xlu0 %859
      %861 = vrot.lane.b32.xlu0 %v844, 127
      %v862 = vpop.permute.xlu0 %861
      %863 = vrot.lane.b32.xlu0 %v845, 127
      %v864 = vpop.permute.xlu0 %863
      %865 = vrot.lane.b32.xlu0 %v846, 127
      %v866 = vpop.permute.xlu0 %865
      %867 = vrot.lane.b32.xlu0 %v847, 127
      %v868 = vpop.permute.xlu0 %867
      %869 = vrot.lane.b32.xlu0 %v848, 127
      %v870 = vpop.permute.xlu0 %869
      %871 = vrot.lane.b32.xlu0 %v849, 127
      %v872 = vpop.permute.xlu0 %871
      %873 = vrot.lane.b32.xlu0 %v850, 127
      %v874 = vpop.permute.xlu0 %873
      %v875 = vsel %vm165, %v860, %v862
      %v876 = vsel %vm165, %v864, %v866
      %v877 = vsel %vm165, %v868, %v870
      %v878 = vsel %vm165, %v872, %v874
      %v883 = vadd.f32 %v683, %v875
      %v884 = vadd.f32 %v684, %v876
      %v885 = vadd.f32 %v685, %v877
      %v886 = vadd.f32 %v686, %v878
      %v887 = vmul.f32 %v673, -1.0
      %v888 = vmul.f32 %v675, -1.0
      %v889 = vmul.f32 %v677, -1.0
      %v890 = vmul.f32 %v679, -1.0
      %v891 = vmul.f32 %v681, -1.0
      %v897 = vrot.slane %v887, 1
      %v898 = vrot.slane %v888, 1
      %v899 = vsel %vm183, %v897, %v898
      %v900 = vrot.slane %v889, 1
      %v901 = vsel %vm183, %v898, %v900
      %v902 = vrot.slane %v890, 1
      %v903 = vsel %vm183, %v900, %v902
      %v904 = vrot.slane %v891, 1
      %v905 = vsel %vm183, %v902, %v904
      %v910 = vadd.f32 %v883, %v899
      %v911 = vadd.f32 %v884, %v901
      %v912 = vadd.f32 %v885, %v903
      %v913 = vadd.f32 %v886, %v905
      %v914 = vadd.f32 %v910, %v803
      %v915 = vadd.f32 %v911, %v804
      %v916 = vadd.f32 %v912, %v805
      %v917 = vadd.f32 %v913, %v806
      %v918 = vld [vmem:[%s114 + $0x2] sm:$0x1]
      %v919 = vadd.f32 %v914, %v915
      %v920 = vadd.f32 %v919, %v916
      %v921 = vadd.f32 %v920, %v917
      %v922 = vrot.slane %v921, 4
      %v923 = vadd.f32 %v921, %v922
      %v924 = vrot.slane %v923, 2
      %v925 = vadd.f32 %v923, %v924
      %v926 = vrot.slane %v925, 1
      %v927 = vadd.f32 %v925, %v926
      %v928 = vadd.f32 %v918, %v927
      %929 = vst [vmem:[%s114 + $0x2] sm:$0x1] %v928
      %v930 = vld [vmem:[%s114 + $0x3] sm:$0x1]
      %v931 = vmul.f32 %v914, %v914
      %v932 = vmul.f32 %v915, %v915
      %v933 = vmul.f32 %v916, %v916
      %v934 = vmul.f32 %v917, %v917
      %v935 = vadd.f32 %v931, %v932
      %v936 = vadd.f32 %v935, %v933
      %v937 = vadd.f32 %v936, %v934
      %v938 = vrot.slane %v937, 4
      %v939 = vadd.f32 %v937, %v938
      %v940 = vrot.slane %v939, 2
      %v941 = vadd.f32 %v939, %v940
      %v942 = vrot.slane %v941, 1
      %v943 = vadd.f32 %v941, %v942
      %v944 = vadd.f32 %v930, %v943
      %945 = vst [vmem:[%s114 + $0x3] sm:$0x1] %v944
      %s946 = smul.u32 12, 2
      %s947 = smul.addr %s946, 8
      %s948 = scalar_lea.vmem %s110, %s947
      %v949 = vld [vmem:[%s948] sm:$0xff]
      %v950 = vld [vmem:[%s948 + $0x8] sm:$0xff]
      %v951 = vld [vmem:[%s948 + $0x10] sm:$0xff]
      %v952 = vld [vmem:[%s948 + $0x18] sm:$0xff]
      %v953 = vld [vmem:[%s948 + $0x20] sm:$0xff]
      %v954 = vld [vmem:[%s948 + $0x28] sm:$0xff]
      %v955 = vld [vmem:[%s948 + $0x30] sm:$0xff]
      %v956 = vld [vmem:[%s948 + $0x38] sm:$0xff]
      %v957 = vld [vmem:[%s948 + $0x40] sm:$0x1]
      %v958 = vld [vmem:[%s948 + $0x48] sm:$0x1]
      %v959 = vmul.f32 %v949, 0.1
      %v960 = vmul.f32 %v951, 0.1
      %v961 = vmul.f32 %v953, 0.1
      %v962 = vmul.f32 %v955, 0.1
      %v963 = vmul.f32 %v949, -2.0
      %v964 = vmul.f32 %v950, -2.0
      %v965 = vmul.f32 %v951, -2.0
      %v966 = vmul.f32 %v952, -2.0
      %v967 = vmul.f32 %v953, -2.0
      %v968 = vmul.f32 %v954, -2.0
      %v969 = vmul.f32 %v955, -2.0
      %v970 = vmul.f32 %v956, -2.0
      %979 = vrot.lane.b32.xlu0 %v963, 127
      %v980 = vpop.permute.xlu0 %979
      %981 = vrot.lane.b32.xlu0 %v964, 127
      %v982 = vpop.permute.xlu0 %981
      %983 = vrot.lane.b32.xlu0 %v965, 127
      %v984 = vpop.permute.xlu0 %983
      %985 = vrot.lane.b32.xlu0 %v966, 127
      %v986 = vpop.permute.xlu0 %985
      %987 = vrot.lane.b32.xlu0 %v967, 127
      %v988 = vpop.permute.xlu0 %987
      %989 = vrot.lane.b32.xlu0 %v968, 127
      %v990 = vpop.permute.xlu0 %989
      %991 = vrot.lane.b32.xlu0 %v969, 127
      %v992 = vpop.permute.xlu0 %991
      %993 = vrot.lane.b32.xlu0 %v970, 127
      %v994 = vpop.permute.xlu0 %993
      %v995 = vsel %vm165, %v980, %v982
      %v996 = vsel %vm165, %v984, %v986
      %v997 = vsel %vm165, %v988, %v990
      %v998 = vsel %vm165, %v992, %v994
      %v1003 = vadd.f32 %v959, %v995
      %v1004 = vadd.f32 %v960, %v996
      %v1005 = vadd.f32 %v961, %v997
      %v1006 = vadd.f32 %v962, %v998
      %v1012 = vrot.slane %v949, 1
      %v1013 = vrot.slane %v951, 1
      %v1014 = vsel %vm183, %v1012, %v1013
      %v1015 = vrot.slane %v953, 1
      %v1016 = vsel %vm183, %v1013, %v1015
      %v1017 = vrot.slane %v955, 1
      %v1018 = vsel %vm183, %v1015, %v1017
      %v1019 = vrot.slane %v957, 1
      %v1020 = vsel %vm183, %v1017, %v1019
      %v1025 = vadd.f32 %v1003, %v1014
      %v1026 = vadd.f32 %v1004, %v1016
      %v1027 = vadd.f32 %v1005, %v1018
      %v1028 = vadd.f32 %v1006, %v1020
      %v1029 = vmul.f32 %v950, 0.1
      %v1030 = vmul.f32 %v952, 0.1
      %v1031 = vmul.f32 %v954, 0.1
      %v1032 = vmul.f32 %v956, 0.1
      %v1033 = vmul.f32 %v957, 0.1
      %v1034 = vmul.f32 %v958, 0.1
      %v1045 = vrot.slane %v959, 1
      %v1046 = vrot.slane %v960, 1
      %v1047 = vsel %vm183, %v1045, %v1046
      %v1048 = vrot.slane %v1029, 1
      %v1049 = vrot.slane %v1030, 1
      %v1050 = vsel %vm183, %v1048, %v1049
      %v1051 = vrot.slane %v961, 1
      %v1052 = vsel %vm183, %v1046, %v1051
      %v1053 = vrot.slane %v1031, 1
      %v1054 = vsel %vm183, %v1049, %v1053
      %v1055 = vrot.slane %v962, 1
      %v1056 = vsel %vm183, %v1051, %v1055
      %v1057 = vrot.slane %v1032, 1
      %v1058 = vsel %vm183, %v1053, %v1057
      %v1059 = vrot.slane %v1033, 1
      %v1060 = vsel %vm183, %v1055, %v1059
      %v1061 = vrot.slane %v1034, 1
      %v1062 = vsel %vm183, %v1057, %v1061
      %1063 = vrot.lane.b32.xlu0 %v1047, 127
      %v1064 = vpop.permute.xlu0 %1063
      %1065 = vrot.lane.b32.xlu0 %v1050, 127
      %v1066 = vpop.permute.xlu0 %1065
      %1067 = vrot.lane.b32.xlu0 %v1052, 127
      %v1068 = vpop.permute.xlu0 %1067
      %1069 = vrot.lane.b32.xlu0 %v1054, 127
      %v1070 = vpop.permute.xlu0 %1069
      %1071 = vrot.lane.b32.xlu0 %v1056, 127
      %v1072 = vpop.permute.xlu0 %1071
      %1073 = vrot.lane.b32.xlu0 %v1058, 127
      %v1074 = vpop.permute.xlu0 %1073
      %1075 = vrot.lane.b32.xlu0 %v1060, 127
      %v1076 = vpop.permute.xlu0 %1075
      %1077 = vrot.lane.b32.xlu0 %v1062, 127
      %v1078 = vpop.permute.xlu0 %1077
      %v1079 = vsel %vm165, %v1064, %v1066
      %v1080 = vsel %vm165, %v1068, %v1070
      %v1081 = vsel %vm165, %v1072, %v1074
      %v1082 = vsel %vm165, %v1076, %v1078
      %v1087 = vadd.f32 %v1025, %v1079
      %v1088 = vadd.f32 %v1026, %v1080
      %v1089 = vadd.f32 %v1027, %v1081
      %v1090 = vadd.f32 %v1028, %v1082
      %v1091 = vld [vmem:[%s114] sm:$0x1]
      %v1092 = vadd.f32 %v1087, %v1088
      %v1093 = vadd.f32 %v1092, %v1089
      %v1094 = vadd.f32 %v1093, %v1090
      %v1095 = vrot.slane %v1094, 4
      %v1096 = vadd.f32 %v1094, %v1095
      %v1097 = vrot.slane %v1096, 2
      %v1098 = vadd.f32 %v1096, %v1097
      %v1099 = vrot.slane %v1098, 1
      %v1100 = vadd.f32 %v1098, %v1099
      %v1101 = vadd.f32 %v1091, %v1100
      %1102 = vst [vmem:[%s114] sm:$0x1] %v1101
      %v1103 = vld [vmem:[%s114 + $0x1] sm:$0x1]
      %v1104 = vmul.f32 %v1087, %v1087
      %v1105 = vmul.f32 %v1088, %v1088
      %v1106 = vmul.f32 %v1089, %v1089
      %v1107 = vmul.f32 %v1090, %v1090
      %v1108 = vadd.f32 %v1104, %v1105
      %v1109 = vadd.f32 %v1108, %v1106
      %v1110 = vadd.f32 %v1109, %v1107
      %v1111 = vrot.slane %v1110, 4
      %v1112 = vadd.f32 %v1110, %v1111
      %v1113 = vrot.slane %v1112, 2
      %v1114 = vadd.f32 %v1112, %v1113
      %v1115 = vrot.slane %v1114, 1
      %v1116 = vadd.f32 %v1114, %v1115
      %v1117 = vadd.f32 %v1103, %v1116
      %1118 = vst [vmem:[%s114 + $0x1] sm:$0x1] %v1117
      %v1119 = vmul.f32 %v949, 2.0
      %v1120 = vmul.f32 %v950, 2.0
      %v1121 = vmul.f32 %v951, 2.0
      %v1122 = vmul.f32 %v952, 2.0
      %v1123 = vmul.f32 %v953, 2.0
      %v1124 = vmul.f32 %v954, 2.0
      %v1125 = vmul.f32 %v955, 2.0
      %v1126 = vmul.f32 %v956, 2.0
      %1135 = vrot.lane.b32.xlu0 %v1119, 127
      %v1136 = vpop.permute.xlu0 %1135
      %1137 = vrot.lane.b32.xlu0 %v1120, 127
      %v1138 = vpop.permute.xlu0 %1137
      %1139 = vrot.lane.b32.xlu0 %v1121, 127
      %v1140 = vpop.permute.xlu0 %1139
      %1141 = vrot.lane.b32.xlu0 %v1122, 127
      %v1142 = vpop.permute.xlu0 %1141
      %1143 = vrot.lane.b32.xlu0 %v1123, 127
      %v1144 = vpop.permute.xlu0 %1143
      %1145 = vrot.lane.b32.xlu0 %v1124, 127
      %v1146 = vpop.permute.xlu0 %1145
      %1147 = vrot.lane.b32.xlu0 %v1125, 127
      %v1148 = vpop.permute.xlu0 %1147
      %1149 = vrot.lane.b32.xlu0 %v1126, 127
      %v1150 = vpop.permute.xlu0 %1149
      %v1151 = vsel %vm165, %v1136, %v1138
      %v1152 = vsel %vm165, %v1140, %v1142
      %v1153 = vsel %vm165, %v1144, %v1146
      %v1154 = vsel %vm165, %v1148, %v1150
      %v1159 = vadd.f32 %v959, %v1151
      %v1160 = vadd.f32 %v960, %v1152
      %v1161 = vadd.f32 %v961, %v1153
      %v1162 = vadd.f32 %v962, %v1154
      %v1163 = vmul.f32 %v949, -1.0
      %v1164 = vmul.f32 %v951, -1.0
      %v1165 = vmul.f32 %v953, -1.0
      %v1166 = vmul.f32 %v955, -1.0
      %v1167 = vmul.f32 %v957, -1.0
      %v1173 = vrot.slane %v1163, 1
      %v1174 = vrot.slane %v1164, 1
      %v1175 = vsel %vm183, %v1173, %v1174
      %v1176 = vrot.slane %v1165, 1
      %v1177 = vsel %vm183, %v1174, %v1176
      %v1178 = vrot.slane %v1166, 1
      %v1179 = vsel %vm183, %v1176, %v1178
      %v1180 = vrot.slane %v1167, 1
      %v1181 = vsel %vm183, %v1178, %v1180
      %v1186 = vadd.f32 %v1159, %v1175
      %v1187 = vadd.f32 %v1160, %v1177
      %v1188 = vadd.f32 %v1161, %v1179
      %v1189 = vadd.f32 %v1162, %v1181
      %v1190 = vadd.f32 %v1186, %v1079
      %v1191 = vadd.f32 %v1187, %v1080
      %v1192 = vadd.f32 %v1188, %v1081
      %v1193 = vadd.f32 %v1189, %v1082
      %v1194 = vld [vmem:[%s114 + $0x2] sm:$0x1]
      %v1195 = vadd.f32 %v1190, %v1191
      %v1196 = vadd.f32 %v1195, %v1192
      %v1197 = vadd.f32 %v1196, %v1193
      %v1198 = vrot.slane %v1197, 4
      %v1199 = vadd.f32 %v1197, %v1198
      %v1200 = vrot.slane %v1199, 2
      %v1201 = vadd.f32 %v1199, %v1200
      %v1202 = vrot.slane %v1201, 1
      %v1203 = vadd.f32 %v1201, %v1202
      %v1204 = vadd.f32 %v1194, %v1203
      %1205 = vst [vmem:[%s114 + $0x2] sm:$0x1] %v1204
      %v1206 = vld [vmem:[%s114 + $0x3] sm:$0x1]
      %v1207 = vmul.f32 %v1190, %v1190
      %v1208 = vmul.f32 %v1191, %v1191
      %v1209 = vmul.f32 %v1192, %v1192
      %v1210 = vmul.f32 %v1193, %v1193
      %v1211 = vadd.f32 %v1207, %v1208
      %v1212 = vadd.f32 %v1211, %v1209
      %v1213 = vadd.f32 %v1212, %v1210
      %v1214 = vrot.slane %v1213, 4
      %v1215 = vadd.f32 %v1213, %v1214
      %v1216 = vrot.slane %v1215, 2
      %v1217 = vadd.f32 %v1215, %v1216
      %v1218 = vrot.slane %v1217, 1
      %v1219 = vadd.f32 %v1217, %v1218
      %v1220 = vadd.f32 %v1206, %v1219
      %1221 = vst [vmem:[%s114 + $0x3] sm:$0x1] %v1220
      %p1222 = scmp.lt.s32.totalorder %s12, 1
      %s1223 = scalar_select %p1222, %s12, 1
      %s1224 = smul.addr %s1223, 4
      %s1225 = scalar_lea.vmem %s1, %s1224
      // Predicated region
      $region25: #{custom_conv_bn_forward.2} parent=23 // pred_check
        %p1226 = pneg %p56
      $region26: #{custom_conv_bn_forward.2} parent=23 // pred_check_branch
        %1228 = sbr.rel (%p1226) target = $region28
      $region27: #{custom_conv_bn_forward.2} parent=23 // pred_region
        _
      $region28: #{custom_conv_bn_forward.2} parent=23 // pred_fallthru
        _
    $region24: #{custom_conv_bn_forward.2} parent=5 // pred_fallthru
      _
    %p1229 = scmp.le.s32.totalorder 2, %s7
    // Predicated region
    $region29: #{custom_conv_bn_forward.2} parent=5 // pred_check
      %p1230 = pneg %p1229
    $region30: #{custom_conv_bn_forward.2} parent=5 // pred_check_branch
      %1232 = sbr.rel (%p1230) target = $region32
    $region31: #{custom_conv_bn_forward.2} parent=5 // pred_region
      %s1233 = ssub.s32 %s7, 2
      // Predicated region
      $region33: #{custom_conv_bn_forward.2} parent=31 // pred_check
        %p1234 = pneg %p62
      $region34: #{custom_conv_bn_forward.2} parent=31 // pred_check_branch
        %1236 = sbr.rel (%p1234) target = $region36
      $region35: #{custom_conv_bn_forward.2} parent=31 // pred_region
        %p1237 = scmp.lt.s32.totalorder %s13, 1
        %s1238 = scalar_select %p1237, %s13, 1
        %s1239 = smul.addr %s1238, 4
        %s1240 = scalar_lea.vmem %s1, %s1239
      $region36: #{custom_conv_bn_forward.2} parent=31 // pred_fallthru
        _
    $region32: #{custom_conv_bn_forward.2} parent=5 // pred_fallthru
      _
  $region6: #{custom_conv_bn_forward.2} parent=0 // loop_footer
    %s11 = sadd.s32 1, %s7
  $region7: #{custom_conv_bn_forward.2} parent=0 // loop_footer_branch
    %6 = sbr.rel target = $region3
  $region8: #{custom_conv_bn_forward.2} parent=0 // loop_exit
    _

// kernel: custom_conv_bn_forward.3
$region0: #{custom_conv_bn_forward.3}
  #allocation0 [shape = 'u32[]', space=smem, size = 0x4, offset = 0x4, fixed_abs, tag = 'smem constant byte address 0x4 - core index']
  #allocation1 [shape = 'u32[144,128]{1,0:T(1,128)}', space=vmem, size = 0x12000, scoped, tag = 'internal scratch']
  %s0 = inlined_call_operand.vmem [shape: f32[2], index: 0, kind: input, shape index: {}]
  %s1 = inlined_call_operand.vmem [shape: f32[2], index: 1, kind: input, shape index: {}]
  %s2 = inlined_call_operand.vmem [shape: f32[2,129,129], index: 2, kind: input, shape index: {}]
  %s3 = inlined_call_operand.hbm [shape: f32[2,2,128,128], index: 3, kind: output, shape index: {}]
  %s4 = sld [smem:[#allocation0]]
  $region53: #{custom_conv_bn_forward.3} parent=0
    _
  %s6 = ssub.s32 1, %s4
  %s7 = scalar_select 0, %s6, %s4
  $region1: #{custom_conv_bn_forward.3} parent=0
    #allocation2 [shape = 'u8[512]{0}', space=smem, size = 0x200, scoped, tag = 'input window, operand 0, single buffered']
    #allocation3 [shape = 's32[2]{0}', space=sflag, size = 0x8, scoped, tag = 'scoped memory for custom_conv_bn_forward.3']
    #allocation4 [shape = 's32[2]{0}', space=sflag, size = 0x8, scoped, tag = 'scoped memory for custom_conv_bn_forward.3']
    #allocation5 [shape = 'u8[512]{0}', space=smem, size = 0x200, scoped, tag = 'input window, operand 1, single buffered']
    #allocation6 [shape = 's32[1]{0}', space=sflag, size = 0x4, scoped, tag = 'scoped memory for custom_conv_bn_forward.3']
    #allocation7 [shape = 'u8[262144]{0}', space=vmem, size = 0x40000, scoped, tag = 'output window, operand 0']
    %8 = vsyncpa [#allocation4], 0
    %9 = vsyncpa [#allocation6], 0
    %10 = vsyncpa [#allocation3], 0
    %s11 = scalar_lea.sflag [#allocation3], 1
    %12 = vsyncpa %s11, 0
    loop: start=0, step=1, limit=4
    $region2: #{custom_conv_bn_forward.3} parent=1 // loop_pre_header
      _
    $region3: #{custom_conv_bn_forward.3} parent=1 // loop_header
      %s14 = sphi 0, %s18
      %p15 = scmp.ge.s32.totalorder %s14, 4
      %s22 = sphi 0, %s22
      %s24 = sphi 0, %s22
      %s25 = sphi 0, %s24
      %s39 = sphi 0, %s25
      %s43 = sphi 0, %s43
      %s45 = sphi 0, %s43
      %s46 = sphi 0, %s45
      %s60 = sphi 0, %s46
      %s66 = sphi 0, %s68
      %s69 = sphi 0, %s66
      %s70 = sphi 0, %s69
      %s86 = sphi 0, %s70
      %s92 = sphi 0, %s94
      %s95 = sphi 0, %s92
      %s96 = sphi 0, %s95
      %s112 = sphi 0, %s96
    $region4: #{custom_conv_bn_forward.3} parent=1 // loop_header_branch
      %17 = sbr.rel (%p15) target = $region8
    $region5: #{custom_conv_bn_forward.3} parent=1 // loop_body
      %s19 = ssub.s32 %s14, 1
      %s20 = ssub.s32 %s14, 2
      %s21 = sadd.s32 %s14, 1
      %s23 = sadd.s32 %s22, 1
      %p26 = scmp.eq.s32.totalorder %s14, 1
      %p27 = scmp.ne.s32.totalorder %s22, %s24
      %p28 = scmp.eq.s32.totalorder %s14, 0
      %p29 = por %p27, %p28
      %p30 = scmp.ne.s32.totalorder %s22, %s24
      %p31 = scmp.eq.s32.totalorder %s19, 1
      %p32 = por %p30, %p31
      %p33 = scmp.ne.s32.totalorder %s24, %s25
      %p34 = scmp.eq.s32.totalorder %s19, 0
      %p35 = por %p33, %p34
      %p36 = scmp.ne.s32.totalorder %s24, %s25
      %p37 = scmp.eq.s32.totalorder %s20, 1
      %p38 = por %p36, %p37
      %p40 = scmp.ne.s32.totalorder %s25, %s39
      %p41 = scmp.eq.s32.totalorder %s20, 0
      %p42 = por %p40, %p41
      %s44 = sadd.s32 %s43, 1
      %p47 = scmp.eq.s32.totalorder %s14, 1
      %p48 = scmp.ne.s32.totalorder %s43, %s45
      %p49 = scmp.eq.s32.totalorder %s14, 0
      %p50 = por %p48, %p49
      %p51 = scmp.ne.s32.totalorder %s43, %s45
      %p52 = scmp.eq.s32.totalorder %s19, 1
      %p53 = por %p51, %p52
      %p54 = scmp.ne.s32.totalorder %s45, %s46
      %p55 = scmp.eq.s32.totalorder %s19, 0
      %p56 = por %p54, %p55
      %p57 = scmp.ne.s32.totalorder %s45, %s46
      %p58 = scmp.eq.s32.totalorder %s20, 1
      %p59 = por %p57, %p58
      %p61 = scmp.ne.s32.totalorder %s46, %s60
      %p62 = scmp.eq.s32.totalorder %s20, 0
      %p63 = por %p61, %p62
      %s64 = ssub.s32 %s14, %s21
      %p65 = scmp.eq.s32.totalorder %s64, 0
      %s67 = sadd.s32 %s66, 1
      %s68 = scalar_select %p65, %s66, %s67
      %p71 = pneg %p65
      %p72 = scmp.eq.s32.totalorder %s14, 1
      %p73 = por %p71, %p72
      %p74 = scmp.ne.s32.totalorder %s66, %s69
      %p75 = scmp.eq.s32.totalorder %s14, 0
      %p76 = por %p74, %p75
      %p77 = scmp.ne.s32.totalorder %s66, %s69
      %p78 = scmp.eq.s32.totalorder %s19, 1
      %p79 = por %p77, %p78
      %p80 = scmp.ne.s32.totalorder %s69, %s70
      %p81 = scmp.eq.s32.totalorder %s19, 0
      %p82 = por %p80, %p81
      %p83 = scmp.ne.s32.totalorder %s69, %s70
      %p84 = scmp.eq.s32.totalorder %s20, 1
      %p85 = por %p83, %p84
      %p87 = scmp.ne.s32.totalorder %s70, %s86
      %p88 = scmp.eq.s32.totalorder %s20, 0
      %p89 = por %p87, %p88
      %s90 = ssub.s32 %s14, %s21
      %p91 = scmp.eq.s32.totalorder %s90, 0
      %s93 = sadd.s32 %s92, 1
      %s94 = scalar_select %p91, %s92, %s93
      %p97 = pneg %p91
      %p98 = scmp.eq.s32.totalorder %s14, 1
      %p99 = por %p97, %p98
      %p100 = scmp.ne.s32.totalorder %s92, %s95
      %p101 = scmp.eq.s32.totalorder %s14, 0
      %p102 = por %p100, %p101
      %p103 = scmp.ne.s32.totalorder %s92, %s95
      %p104 = scmp.eq.s32.totalorder %s19, 1
      %p105 = por %p103, %p104
      %p106 = scmp.ne.s32.totalorder %s95, %s96
      %p107 = scmp.eq.s32.totalorder %s19, 0
      %p108 = por %p106, %p107
      %p109 = scmp.ne.s32.totalorder %s95, %s96
      %p110 = scmp.eq.s32.totalorder %s20, 1
      %p111 = por %p109, %p110
      %p113 = scmp.ne.s32.totalorder %s96, %s112
      %p114 = scmp.eq.s32.totalorder %s20, 0
      %p115 = por %p113, %p114
      %p116 = scmp.le.s32.totalorder 1, %s14
      %p117 = scmp.lt.s32.totalorder %s14, 3
      %p118 = pnand %p116, %p117
      %p119 = pneg %p118
      // Predicated region
      $region9: #{custom_conv_bn_forward.3} parent=5 // pred_check
        _
      $region10: #{custom_conv_bn_forward.3} parent=5 // pred_check_branch
        %121 = sbr.rel (%p118) target = $region12
      $region11: #{custom_conv_bn_forward.3} parent=5 // pred_region
        %s122 = ssub.s32 %s14, 1
        // Predicated region
        $region13: #{custom_conv_bn_forward.3} parent=11 // pred_check
          %p123 = pneg %p35
        $region14: #{custom_conv_bn_forward.3} parent=11 // pred_check_branch
          %125 = sbr.rel (%p123) target = $region16
        $region15: #{custom_conv_bn_forward.3} parent=11 // pred_region
          %s127 = ssub.s32 16, 16
          %128 = vsyncadd [#allocation4], %s127
          %s130 = sshll.u32 %s0, 4
          %s131 = int_to_ptr.vmem [resolvable:$true] %s130
          %133 = dma.vmem_to_smem %s131, 16, [#allocation2], [#allocation4]
        $region16: #{custom_conv_bn_forward.3} parent=11 // pred_fallthru
          _
        // Predicated region
        $region17: #{custom_conv_bn_forward.3} parent=11 // pred_check
          %p134 = pneg %p56
        $region18: #{custom_conv_bn_forward.3} parent=11 // pred_check_branch
          %136 = sbr.rel (%p134) target = $region20
        $region19: #{custom_conv_bn_forward.3} parent=11 // pred_region
          %s138 = ssub.s32 16, 16
          %139 = vsyncadd [#allocation6], %s138
          %s141 = sshll.u32 %s1, 4
          %s142 = int_to_ptr.vmem [resolvable:$true] %s141
          %144 = dma.vmem_to_smem %s142, 16, [#allocation5], [#allocation6]
        $region20: #{custom_conv_bn_forward.3} parent=11 // pred_fallthru
          _
      $region12: #{custom_conv_bn_forward.3} parent=5 // pred_fallthru
        _
      %p145 = scmp.lt.s32.totalorder %s14, 2
      // Predicated region
      $region21: #{custom_conv_bn_forward.3} parent=5 // pred_check
        %p146 = pneg %p145
      $region22: #{custom_conv_bn_forward.3} parent=5 // pred_check_branch
        %148 = sbr.rel (%p146) target = $region24
      $region23: #{custom_conv_bn_forward.3} parent=5 // pred_region
        // Predicated region
        $region25: #{custom_conv_bn_forward.3} parent=23 // pred_check
          %p149 = pneg %p76
        $region26: #{custom_conv_bn_forward.3} parent=23 // pred_check_branch
          %151 = sbr.rel (%p149) target = $region28
        $region27: #{custom_conv_bn_forward.3} parent=23 // pred_region
          %p152 = scmp.lt.s32.totalorder %s14, 1
          %s153 = scalar_select %p152, %s14, 1
          %s154 = smul.addr %s153, 34
          %s155 = smul.addr %s154, 8
          %s156 = scalar_lea.vmem %s2, %s155
        $region28: #{custom_conv_bn_forward.3} parent=23 // pred_fallthru
          _
      $region24: #{custom_conv_bn_forward.3} parent=5 // pred_fallthru
        _
      %p157 = scmp.le.s32.totalorder 1, %s14
      %p158 = scmp.lt.s32.totalorder %s14, 3
      %p159 = pnand %p157, %p158
      %p160 = pneg %p159
      // Predicated region
      $region29: #{custom_conv_bn_forward.3} parent=5 // pred_check
        _
      $region30: #{custom_conv_bn_forward.3} parent=5 // pred_check_branch
        %162 = sbr.rel (%p159) target = $region32
      $region31: #{custom_conv_bn_forward.3} parent=5 // pred_region
        %s163 = ssub.s32 %s14, 1
        // Predicated region
        $region33: #{custom_conv_bn_forward.3} parent=31 // pred_check
          %p164 = pneg %p35
        $region34: #{custom_conv_bn_forward.3} parent=31 // pred_check_branch
          %166 = sbr.rel (%p164) target = $region36
        $region35: #{custom_conv_bn_forward.3} parent=31 // pred_region
          %167 = dma.done [#allocation4], 16
        $region36: #{custom_conv_bn_forward.3} parent=31 // pred_fallthru
          _
        // Predicated region
        $region37: #{custom_conv_bn_forward.3} parent=31 // pred_check
          %p168 = pneg %p56
        $region38: #{custom_conv_bn_forward.3} parent=31 // pred_check_branch
          %170 = sbr.rel (%p168) target = $region40
        $region39: #{custom_conv_bn_forward.3} parent=31 // pred_region
          %171 = dma.done [#allocation6], 16
        $region40: #{custom_conv_bn_forward.3} parent=31 // pred_fallthru
          _
        %172 = sfence
        %p173 = pneg %p35
        %p174 = pneg %p32
        %p175 = pneg %p56
        %p176 = pneg %p53
        %p177 = scmp.lt.s32.totalorder %s19, 1
        %s178 = scalar_select %p177, %s19, 1
        %s179 = smul.addr %s178, 34
        %s180 = smul.addr %s179, 8
        %s181 = scalar_lea.vmem %s2, %s180
        %p182 = pneg %p82
        %p183 = pneg %p79
        %p184 = pneg %p108
        %p185 = pneg %p105
        %s186 = sand.u32 %s95, 1
        %s187 = scalar_lea.sflag [#allocation3], %s186
        %s188 = sand.u32 %s95, 1
        %s189 = smul.addr %s188, 256
        %s190 = scalar_lea.vmem [#allocation7], %s189
        %p191 = scmp.lt.s32.totalorder %s19, 1
        %s192 = scalar_select %p191, %s19, 1
        %s193 = smul.addr %s192, 34
        %s194 = smul.addr %s193, 8
        %s195 = scalar_lea.vmem %s2, %s194
        %s196 = sld [smem:[#allocation2]]
        %s197 = sld [smem:[#allocation2 + $0x1]]
        %s198 = sld [smem:[#allocation5]]
        %s199 = sld [smem:[#allocation5 + $0x1]]
        %s200 = smul.u32 0, 2
        %s201 = smul.addr %s200, 8
        %s202 = scalar_lea.vmem %s195, %s201
        %v203 = vld [vmem:[%s202] sm:$0xff]
        %v204 = vld [vmem:[%s202 + $0x8] sm:$0xff]
        %v205 = vld [vmem:[%s202 + $0x10] sm:$0xff]
        %v206 = vld [vmem:[%s202 + $0x18] sm:$0xff]
        %v207 = vld [vmem:[%s202 + $0x20] sm:$0xff]
        %v208 = vld [vmem:[%s202 + $0x28] sm:$0xff]
        %v209 = vld [vmem:[%s202 + $0x30] sm:$0xff]
        %v210 = vld [vmem:[%s202 + $0x38] sm:$0xff]
        %v211 = vld [vmem:[%s202 + $0x40] sm:$0x1]
        %v212 = vld [vmem:[%s202 + $0x48] sm:$0x1]
        %v213 = vmul.f32 %v203, 0.1
        %v214 = vmul.f32 %v205, 0.1
        %v215 = vmul.f32 %v207, 0.1
        %v216 = vmul.f32 %v209, 0.1
        %v217 = vmul.f32 %v203, -2.0
        %v218 = vmul.f32 %v204, -2.0
        %v219 = vmul.f32 %v205, -2.0
        %v220 = vmul.f32 %v206, -2.0
        %v221 = vmul.f32 %v207, -2.0
        %v222 = vmul.f32 %v208, -2.0
        %v223 = vmul.f32 %v209, -2.0
        %v224 = vmul.f32 %v210, -2.0
        %233 = vrot.lane.b32.xlu0 %v217, 127
        %v234 = vpop.permute.xlu0 %233
        %235 = vrot.lane.b32.xlu0 %v218, 127
        %v236 = vpop.permute.xlu0 %235
        %237 = vrot.lane.b32.xlu0 %v219, 127
        %v238 = vpop.permute.xlu0 %237
        %239 = vrot.lane.b32.xlu0 %v220, 127
        %v240 = vpop.permute.xlu0 %239
        %241 = vrot.lane.b32.xlu0 %v221, 127
        %v242 = vpop.permute.xlu0 %241
        %243 = vrot.lane.b32.xlu0 %v222, 127
        %v244 = vpop.permute.xlu0 %243
        %245 = vrot.lane.b32.xlu0 %v223, 127
        %v246 = vpop.permute.xlu0 %245
        %247 = vrot.lane.b32.xlu0 %v224, 127
        %v248 = vpop.permute.xlu0 %247
        %vm249 = vcmask 1039360
        %v250 = vsel %vm249, %v234, %v236
        %v251 = vsel %vm249, %v238, %v240
        %v252 = vsel %vm249, %v242, %v244
        %v253 = vsel %vm249, %v246, %v248
        %v258 = vadd.f32 %v213, %v250
        %v259 = vadd.f32 %v214, %v251
        %v260 = vadd.f32 %v215, %v252
        %v261 = vadd.f32 %v216, %v253
        %vm267 = vcmask 1046528
        %v268 = vrot.slane %v203, 1
        %v269 = vrot.slane %v205, 1
        %v270 = vsel %vm267, %v268, %v269
        %v271 = vrot.slane %v207, 1
        %v272 = vsel %vm267, %v269, %v271
        %v273 = vrot.slane %v209, 1
        %v274 = vsel %vm267, %v271, %v273
        %v275 = vrot.slane %v211, 1
        %v276 = vsel %vm267, %v273, %v275
        %v281 = vadd.f32 %v258, %v270
        %v282 = vadd.f32 %v259, %v272
        %v283 = vadd.f32 %v260, %v274
        %v284 = vadd.f32 %v261, %v276
        %v285 = vmul.f32 %v204, 0.1
        %v286 = vmul.f32 %v206, 0.1
        %v287 = vmul.f32 %v208, 0.1
        %v288 = vmul.f32 %v210, 0.1
        %v289 = vmul.f32 %v211, 0.1
        %v290 = vmul.f32 %v212, 0.1
        %v301 = vrot.slane %v213, 1
        %v302 = vrot.slane %v214, 1
        %v303 = vsel %vm267, %v301, %v302
        %v304 = vrot.slane %v285, 1
        %v305 = vrot.slane %v286, 1
        %v306 = vsel %vm267, %v304, %v305
        %v307 = vrot.slane %v215, 1
        %v308 = vsel %vm267, %v302, %v307
        %v309 = vrot.slane %v287, 1
        %v310 = vsel %vm267, %v305, %v309
        %v311 = vrot.slane %v216, 1
        %v312 = vsel %vm267, %v307, %v311
        %v313 = vrot.slane %v288, 1
        %v314 = vsel %vm267, %v309, %v313
        %v315 = vrot.slane %v289, 1
        %v316 = vsel %vm267, %v311, %v315
        %v317 = vrot.slane %v290, 1
        %v318 = vsel %vm267, %v313, %v317
        %319 = vrot.lane.b32.xlu0 %v303, 127
        %v320 = vpop.permute.xlu0 %319
        %321 = vrot.lane.b32.xlu0 %v306, 127
        %v322 = vpop.permute.xlu0 %321
        %323 = vrot.lane.b32.xlu0 %v308, 127
        %v324 = vpop.permute.xlu0 %323
        %325 = vrot.lane.b32.xlu0 %v310, 127
        %v326 = vpop.permute.xlu0 %325
        %327 = vrot.lane.b32.xlu0 %v312, 127
        %v328 = vpop.permute.xlu0 %327
        %329 = vrot.lane.b32.xlu0 %v314, 127
        %v330 = vpop.permute.xlu0 %329
        %331 = vrot.lane.b32.xlu0 %v316, 127
        %v332 = vpop.permute.xlu0 %331
        %333 = vrot.lane.b32.xlu0 %v318, 127
        %v334 = vpop.permute.xlu0 %333
        %v335 = vsel %vm249, %v320, %v322
        %v336 = vsel %vm249, %v324, %v326
        %v337 = vsel %vm249, %v328, %v330
        %v338 = vsel %vm249, %v332, %v334
        %v343 = vadd.f32 %v281, %v335
        %v344 = vadd.f32 %v282, %v336
        %v345 = vadd.f32 %v283, %v337
        %v346 = vadd.f32 %v284, %v338
        %v347 = vstv %s196
        %v348 = vmul.f32 %v343, %v347
        %v349 = vmul.f32 %v344, %v347
        %v350 = vmul.f32 %v345, %v347
        %v351 = vmul.f32 %v346, %v347
        %v352 = vstv %s198
        %v353 = vadd.f32 %v348, %v352
        %v354 = vadd.f32 %v349, %v352
        %v355 = vadd.f32 %v350, %v352
        %v356 = vadd.f32 %v351, %v352
        %357 = vst [vmem:[%s190] sm:$0xff] %v353
        %358 = vst [vmem:[%s190 + $0x8] sm:$0xff] %v354
        %359 = vst [vmem:[%s190 + $0x10] sm:$0xff] %v355
        %360 = vst [vmem:[%s190 + $0x18] sm:$0xff] %v356
        %v361 = vmul.f32 %v203, 2.0
        %v362 = vmul.f32 %v204, 2.0
        %v363 = vmul.f32 %v205, 2.0
        %v364 = vmul.f32 %v206, 2.0
        %v365 = vmul.f32 %v207, 2.0
        %v366 = vmul.f32 %v208, 2.0
        %v367 = vmul.f32 %v209, 2.0
        %v368 = vmul.f32 %v210, 2.0
        %377 = vrot.lane.b32.xlu0 %v361, 127
        %v378 = vpop.permute.xlu0 %377
        %379 = vrot.lane.b32.xlu0 %v362, 127
        %v380 = vpop.permute.xlu0 %379
        %381 = vrot.lane.b32.xlu0 %v363, 127
        %v382 = vpop.permute.xlu0 %381
        %383 = vrot.lane.b32.xlu0 %v364, 127
        %v384 = vpop.permute.xlu0 %383
        %385 = vrot.lane.b32.xlu0 %v365, 127
        %v386 = vpop.permute.xlu0 %385
        %387 = vrot.lane.b32.xlu0 %v366, 127
        %v388 = vpop.permute.xlu0 %387
        %389 = vrot.lane.b32.xlu0 %v367, 127
        %v390 = vpop.permute.xlu0 %389
        %391 = vrot.lane.b32.xlu0 %v368, 127
        %v392 = vpop.permute.xlu0 %391
        %v393 = vsel %vm249, %v378, %v380
        %v394 = vsel %vm249, %v382, %v384
        %v395 = vsel %vm249, %v386, %v388
        %v396 = vsel %vm249, %v390, %v392
        %v401 = vadd.f32 %v213, %v393
        %v402 = vadd.f32 %v214, %v394
        %v403 = vadd.f32 %v215, %v395
        %v404 = vadd.f32 %v216, %v396
        %v405 = vmul.f32 %v203, -1.0
        %v406 = vmul.f32 %v205, -1.0
        %v407 = vmul.f32 %v207, -1.0
        %v408 = vmul.f32 %v209, -1.0
        %v409 = vmul.f32 %v211, -1.0
        %v415 = vrot.slane %v405, 1
        %v416 = vrot.slane %v406, 1
        %v417 = vsel %vm267, %v415, %v416
        %v418 = vrot.slane %v407, 1
        %v419 = vsel %vm267, %v416, %v418
        %v420 = vrot.slane %v408, 1
        %v421 = vsel %vm267, %v418, %v420
        %v422 = vrot.slane %v409, 1
        %v423 = vsel %vm267, %v420, %v422
        %v428 = vadd.f32 %v401, %v417
        %v429 = vadd.f32 %v402, %v419
        %v430 = vadd.f32 %v403, %v421
        %v431 = vadd.f32 %v404, %v423
        %v432 = vadd.f32 %v428, %v335
        %v433 = vadd.f32 %v429, %v336
        %v434 = vadd.f32 %v430, %v337
        %v435 = vadd.f32 %v431, %v338
        %v436 = vstv %s197
        %v437 = vmul.f32 %v432, %v436
        %v438 = vmul.f32 %v433, %v436
        %v439 = vmul.f32 %v434, %v436
        %v440 = vmul.f32 %v435, %v436
        %v441 = vstv %s199
        %v442 = vadd.f32 %v437, %v441
        %v443 = vadd.f32 %v438, %v441
        %v444 = vadd.f32 %v439, %v441
        %v445 = vadd.f32 %v440, %v441
        %s446 = sadd.s32 0, 128
        %s447 = scalar_lea.vmem %s190, %s446 [#allocation7]
        %448 = vst [vmem:[%s447] sm:$0xff] %v442
        %449 = vst [vmem:[%s447 + $0x8] sm:$0xff] %v443
        %450 = vst [vmem:[%s447 + $0x10] sm:$0xff] %v444
        %451 = vst [vmem:[%s447 + $0x18] sm:$0xff] %v445
        %s452 = smul.u32 4, 2
        %s453 = smul.addr %s452, 8
        %s454 = scalar_lea.vmem %s195, %s453
        %v455 = vld [vmem:[%s454] sm:$0xff]
        %v456 = vld [vmem:[%s454 + $0x8] sm:$0xff]
        %v457 = vld [vmem:[%s454 + $0x10] sm:$0xff]
        %v458 = vld [vmem:[%s454 + $0x18] sm:$0xff]
        %v459 = vld [vmem:[%s454 + $0x20] sm:$0xff]
        %v460 = vld [vmem:[%s454 + $0x28] sm:$0xff]
        %v461 = vld [vmem:[%s454 + $0x30] sm:$0xff]
        %v462 = vld [vmem:[%s454 + $0x38] sm:$0xff]
        %v463 = vld [vmem:[%s454 + $0x40] sm:$0x1]
        %v464 = vld [vmem:[%s454 + $0x48] sm:$0x1]
        %v465 = vmul.f32 %v455, 0.1
        %v466 = vmul.f32 %v457, 0.1
        %v467 = vmul.f32 %v459, 0.1
        %v468 = vmul.f32 %v461, 0.1
        %v469 = vmul.f32 %v455, -2.0
        %v470 = vmul.f32 %v456, -2.0
        %v471 = vmul.f32 %v457, -2.0
        %v472 = vmul.f32 %v458, -2.0
        %v473 = vmul.f32 %v459, -2.0
        %v474 = vmul.f32 %v460, -2.0
        %v475 = vmul.f32 %v461, -2.0
        %v476 = vmul.f32 %v462, -2.0
        %485 = vrot.lane.b32.xlu0 %v469, 127
        %v486 = vpop.permute.xlu0 %485
        %487 = vrot.lane.b32.xlu0 %v470, 127
        %v488 = vpop.permute.xlu0 %487
        %489 = vrot.lane.b32.xlu0 %v471, 127
        %v490 = vpop.permute.xlu0 %489
        %491 = vrot.lane.b32.xlu0 %v472, 127
        %v492 = vpop.permute.xlu0 %491
        %493 = vrot.lane.b32.xlu0 %v473, 127
        %v494 = vpop.permute.xlu0 %493
        %495 = vrot.lane.b32.xlu0 %v474, 127
        %v496 = vpop.permute.xlu0 %495
        %497 = vrot.lane.b32.xlu0 %v475, 127
        %v498 = vpop.permute.xlu0 %497
        %499 = vrot.lane.b32.xlu0 %v476, 127
        %v500 = vpop.permute.xlu0 %499
        %v501 = vsel %vm249, %v486, %v488
        %v502 = vsel %vm249, %v490, %v492
        %v503 = vsel %vm249, %v494, %v496
        %v504 = vsel %vm249, %v498, %v500
        %v509 = vadd.f32 %v465, %v501
        %v510 = vadd.f32 %v466, %v502
        %v511 = vadd.f32 %v467, %v503
        %v512 = vadd.f32 %v468, %v504
        %v518 = vrot.slane %v455, 1
        %v519 = vrot.slane %v457, 1
        %v520 = vsel %vm267, %v518, %v519
        %v521 = vrot.slane %v459, 1
        %v522 = vsel %vm267, %v519, %v521
        %v523 = vrot.slane %v461, 1
        %v524 = vsel %vm267, %v521, %v523
        %v525 = vrot.slane %v463, 1
        %v526 = vsel %vm267, %v523, %v525
        %v531 = vadd.f32 %v509, %v520
        %v532 = vadd.f32 %v510, %v522
        %v533 = vadd.f32 %v511, %v524
        %v534 = vadd.f32 %v512, %v526
        %v535 = vmul.f32 %v456, 0.1
        %v536 = vmul.f32 %v458, 0.1
        %v537 = vmul.f32 %v460, 0.1
        %v538 = vmul.f32 %v462, 0.1
        %v539 = vmul.f32 %v463, 0.1
        %v540 = vmul.f32 %v464, 0.1
        %v551 = vrot.slane %v465, 1
        %v552 = vrot.slane %v466, 1
        %v553 = vsel %vm267, %v551, %v552
        %v554 = vrot.slane %v535, 1
        %v555 = vrot.slane %v536, 1
        %v556 = vsel %vm267, %v554, %v555
        %v557 = vrot.slane %v467, 1
        %v558 = vsel %vm267, %v552, %v557
        %v559 = vrot.slane %v537, 1
        %v560 = vsel %vm267, %v555, %v559
        %v561 = vrot.slane %v468, 1
        %v562 = vsel %vm267, %v557, %v561
        %v563 = vrot.slane %v538, 1
        %v564 = vsel %vm267, %v559, %v563
        %v565 = vrot.slane %v539, 1
        %v566 = vsel %vm267, %v561, %v565
        %v567 = vrot.slane %v540, 1
        %v568 = vsel %vm267, %v563, %v567
        %569 = vrot.lane.b32.xlu0 %v553, 127
        %v570 = vpop.permute.xlu0 %569
        %571 = vrot.lane.b32.xlu0 %v556, 127
        %v572 = vpop.permute.xlu0 %571
        %573 = vrot.lane.b32.xlu0 %v558, 127
        %v574 = vpop.permute.xlu0 %573
        %575 = vrot.lane.b32.xlu0 %v560, 127
        %v576 = vpop.permute.xlu0 %575
        %577 = vrot.lane.b32.xlu0 %v562, 127
        %v578 = vpop.permute.xlu0 %577
        %579 = vrot.lane.b32.xlu0 %v564, 127
        %v580 = vpop.permute.xlu0 %579
        %581 = vrot.lane.b32.xlu0 %v566, 127
        %v582 = vpop.permute.xlu0 %581
        %583 = vrot.lane.b32.xlu0 %v568, 127
        %v584 = vpop.permute.xlu0 %583
        %v585 = vsel %vm249, %v570, %v572
        %v586 = vsel %vm249, %v574, %v576
        %v587 = vsel %vm249, %v578, %v580
        %v588 = vsel %vm249, %v582, %v584
        %v593 = vadd.f32 %v531, %v585
        %v594 = vadd.f32 %v532, %v586
        %v595 = vadd.f32 %v533, %v587
        %v596 = vadd.f32 %v534, %v588
        %v597 = vmul.f32 %v593, %v347
        %v598 = vmul.f32 %v594, %v347
        %v599 = vmul.f32 %v595, %v347
        %v600 = vmul.f32 %v596, %v347
        %v601 = vadd.f32 %v597, %v352
        %v602 = vadd.f32 %v598, %v352
        %v603 = vadd.f32 %v599, %v352
        %v604 = vadd.f32 %v600, %v352
        %s605 = scalar_lea.vmem %s190, 32 [#allocation7]
        %606 = vst [vmem:[%s605] sm:$0xff] %v601
        %607 = vst [vmem:[%s605 + $0x8] sm:$0xff] %v602
        %608 = vst [vmem:[%s605 + $0x10] sm:$0xff] %v603
        %609 = vst [vmem:[%s605 + $0x18] sm:$0xff] %v604
        %v610 = vmul.f32 %v455, 2.0
        %v611 = vmul.f32 %v456, 2.0
        %v612 = vmul.f32 %v457, 2.0
        %v613 = vmul.f32 %v458, 2.0
        %v614 = vmul.f32 %v459, 2.0
        %v615 = vmul.f32 %v460, 2.0
        %v616 = vmul.f32 %v461, 2.0
        %v617 = vmul.f32 %v462, 2.0
        %626 = vrot.lane.b32.xlu0 %v610, 127
        %v627 = vpop.permute.xlu0 %626
        %628 = vrot.lane.b32.xlu0 %v611, 127
        %v629 = vpop.permute.xlu0 %628
        %630 = vrot.lane.b32.xlu0 %v612, 127
        %v631 = vpop.permute.xlu0 %630
        %632 = vrot.lane.b32.xlu0 %v613, 127
        %v633 = vpop.permute.xlu0 %632
        %634 = vrot.lane.b32.xlu0 %v614, 127
        %v635 = vpop.permute.xlu0 %634
        %636 = vrot.lane.b32.xlu0 %v615, 127
        %v637 = vpop.permute.xlu0 %636
        %638 = vrot.lane.b32.xlu0 %v616, 127
        %v639 = vpop.permute.xlu0 %638
        %640 = vrot.lane.b32.xlu0 %v617, 127
        %v641 = vpop.permute.xlu0 %640
        %v642 = vsel %vm249, %v627, %v629
        %v643 = vsel %vm249, %v631, %v633
        %v644 = vsel %vm249, %v635, %v637
        %v645 = vsel %vm249, %v639, %v641
        %v650 = vadd.f32 %v465, %v642
        %v651 = vadd.f32 %v466, %v643
        %v652 = vadd.f32 %v467, %v644
        %v653 = vadd.f32 %v468, %v645
        %v654 = vmul.f32 %v455, -1.0
        %v655 = vmul.f32 %v457, -1.0
        %v656 = vmul.f32 %v459, -1.0
        %v657 = vmul.f32 %v461, -1.0
        %v658 = vmul.f32 %v463, -1.0
        %v664 = vrot.slane %v654, 1
        %v665 = vrot.slane %v655, 1
        %v666 = vsel %vm267, %v664, %v665
        %v667 = vrot.slane %v656, 1
        %v668 = vsel %vm267, %v665, %v667
        %v669 = vrot.slane %v657, 1
        %v670 = vsel %vm267, %v667, %v669
        %v671 = vrot.slane %v658, 1
        %v672 = vsel %vm267, %v669, %v671
        %v677 = vadd.f32 %v650, %v666
        %v678 = vadd.f32 %v651, %v668
        %v679 = vadd.f32 %v652, %v670
        %v680 = vadd.f32 %v653, %v672
        %v681 = vadd.f32 %v677, %v585
        %v682 = vadd.f32 %v678, %v586
        %v683 = vadd.f32 %v679, %v587
        %v684 = vadd.f32 %v680, %v588
        %v685 = vmul.f32 %v681, %v436
        %v686 = vmul.f32 %v682, %v436
        %v687 = vmul.f32 %v683, %v436
        %v688 = vmul.f32 %v684, %v436
        %v689 = vadd.f32 %v685, %v441
        %v690 = vadd.f32 %v686, %v441
        %v691 = vadd.f32 %v687, %v441
        %v692 = vadd.f32 %v688, %v441
        %s693 = sadd.s32 32, 128
        %s694 = scalar_lea.vmem %s190, %s693 [#allocation7]
        %695 = vst [vmem:[%s694] sm:$0xff] %v689
        %696 = vst [vmem:[%s694 + $0x8] sm:$0xff] %v690
        %697 = vst [vmem:[%s694 + $0x10] sm:$0xff] %v691
        %698 = vst [vmem:[%s694 + $0x18] sm:$0xff] %v692
        %s699 = smul.u32 8, 2
        %s700 = smul.addr %s699, 8
        %s701 = scalar_lea.vmem %s195, %s700
        %v702 = vld [vmem:[%s701] sm:$0xff]
        %v703 = vld [vmem:[%s701 + $0x8] sm:$0xff]
        %v704 = vld [vmem:[%s701 + $0x10] sm:$0xff]
        %v705 = vld [vmem:[%s701 + $0x18] sm:$0xff]
        %v706 = vld [vmem:[%s701 + $0x20] sm:$0xff]
        %v707 = vld [vmem:[%s701 + $0x28] sm:$0xff]
        %v708 = vld [vmem:[%s701 + $0x30] sm:$0xff]
        %v709 = vld [vmem:[%s701 + $0x38] sm:$0xff]
        %v710 = vld [vmem:[%s701 + $0x40] sm:$0x1]
        %v711 = vld [vmem:[%s701 + $0x48] sm:$0x1]
        %v712 = vmul.f32 %v702, 0.1
        %v713 = vmul.f32 %v704, 0.1
        %v714 = vmul.f32 %v706, 0.1
        %v715 = vmul.f32 %v708, 0.1
        %v716 = vmul.f32 %v702, -2.0
        %v717 = vmul.f32 %v703, -2.0
        %v718 = vmul.f32 %v704, -2.0
        %v719 = vmul.f32 %v705, -2.0
        %v720 = vmul.f32 %v706, -2.0
        %v721 = vmul.f32 %v707, -2.0
        %v722 = vmul.f32 %v708, -2.0
        %v723 = vmul.f32 %v709, -2.0
        %732 = vrot.lane.b32.xlu0 %v716, 127
        %v733 = vpop.permute.xlu0 %732
        %734 = vrot.lane.b32.xlu0 %v717, 127
        %v735 = vpop.permute.xlu0 %734
        %736 = vrot.lane.b32.xlu0 %v718, 127
        %v737 = vpop.permute.xlu0 %736
        %738 = vrot.lane.b32.xlu0 %v719, 127
        %v739 = vpop.permute.xlu0 %738
        %740 = vrot.lane.b32.xlu0 %v720, 127
        %v741 = vpop.permute.xlu0 %740
        %742 = vrot.lane.b32.xlu0 %v721, 127
        %v743 = vpop.permute.xlu0 %742
        %744 = vrot.lane.b32.xlu0 %v722, 127
        %v745 = vpop.permute.xlu0 %744
        %746 = vrot.lane.b32.xlu0 %v723, 127
        %v747 = vpop.permute.xlu0 %746
        %v748 = vsel %vm249, %v733, %v735
        %v749 = vsel %vm249, %v737, %v739
        %v750 = vsel %vm249, %v741, %v743
        %v751 = vsel %vm249, %v745, %v747
        %v756 = vadd.f32 %v712, %v748
        %v757 = vadd.f32 %v713, %v749
        %v758 = vadd.f32 %v714, %v750
        %v759 = vadd.f32 %v715, %v751
        %v765 = vrot.slane %v702, 1
        %v766 = vrot.slane %v704, 1
        %v767 = vsel %vm267, %v765, %v766
        %v768 = vrot.slane %v706, 1
        %v769 = vsel %vm267, %v766, %v768
        %v770 = vrot.slane %v708, 1
        %v771 = vsel %vm267, %v768, %v770
        %v772 = vrot.slane %v710, 1
        %v773 = vsel %vm267, %v770, %v772
        %v778 = vadd.f32 %v756, %v767
        %v779 = vadd.f32 %v757, %v769
        %v780 = vadd.f32 %v758, %v771
        %v781 = vadd.f32 %v759, %v773
        %v782 = vmul.f32 %v703, 0.1
        %v783 = vmul.f32 %v705, 0.1
        %v784 = vmul.f32 %v707, 0.1
        %v785 = vmul.f32 %v709, 0.1
        %v786 = vmul.f32 %v710, 0.1
        %v787 = vmul.f32 %v711, 0.1
        %v798 = vrot.slane %v712, 1
        %v799 = vrot.slane %v713, 1
        %v800 = vsel %vm267, %v798, %v799
        %v801 = vrot.slane %v782, 1
        %v802 = vrot.slane %v783, 1
        %v803 = vsel %vm267, %v801, %v802
        %v804 = vrot.slane %v714, 1
        %v805 = vsel %vm267, %v799, %v804
        %v806 = vrot.slane %v784, 1
        %v807 = vsel %vm267, %v802, %v806
        %v808 = vrot.slane %v715, 1
        %v809 = vsel %vm267, %v804, %v808
        %v810 = vrot.slane %v785, 1
        %v811 = vsel %vm267, %v806, %v810
        %v812 = vrot.slane %v786, 1
        %v813 = vsel %vm267, %v808, %v812
        %v814 = vrot.slane %v787, 1
        %v815 = vsel %vm267, %v810, %v814
        %816 = vrot.lane.b32.xlu0 %v800, 127
        %v817 = vpop.permute.xlu0 %816
        %818 = vrot.lane.b32.xlu0 %v803, 127
        %v819 = vpop.permute.xlu0 %818
        %820 = vrot.lane.b32.xlu0 %v805, 127
        %v821 = vpop.permute.xlu0 %820
        %822 = vrot.lane.b32.xlu0 %v807, 127
        %v823 = vpop.permute.xlu0 %822
        %824 = vrot.lane.b32.xlu0 %v809, 127
        %v825 = vpop.permute.xlu0 %824
        %826 = vrot.lane.b32.xlu0 %v811, 127
        %v827 = vpop.permute.xlu0 %826
        %828 = vrot.lane.b32.xlu0 %v813, 127
        %v829 = vpop.permute.xlu0 %828
        %830 = vrot.lane.b32.xlu0 %v815, 127
        %v831 = vpop.permute.xlu0 %830
        %v832 = vsel %vm249, %v817, %v819
        %v833 = vsel %vm249, %v821, %v823
        %v834 = vsel %vm249, %v825, %v827
        %v835 = vsel %vm249, %v829, %v831
        %v840 = vadd.f32 %v778, %v832
        %v841 = vadd.f32 %v779, %v833
        %v842 = vadd.f32 %v780, %v834
        %v843 = vadd.f32 %v781, %v835
        %v844 = vmul.f32 %v840, %v347
        %v845 = vmul.f32 %v841, %v347
        %v846 = vmul.f32 %v842, %v347
        %v847 = vmul.f32 %v843, %v347
        %v848 = vadd.f32 %v844, %v352
        %v849 = vadd.f32 %v845, %v352
        %v850 = vadd.f32 %v846, %v352
        %v851 = vadd.f32 %v847, %v352
        %s852 = scalar_lea.vmem %s190, 64 [#allocation7]
        %853 = vst [vmem:[%s852] sm:$0xff] %v848
        %854 = vst [vmem:[%s852 + $0x8] sm:$0xff] %v849
        %855 = vst [vmem:[%s852 + $0x10] sm:$0xff] %v850
        %856 = vst [vmem:[%s852 + $0x18] sm:$0xff] %v851
        %v857 = vmul.f32 %v702, 2.0
        %v858 = vmul.f32 %v703, 2.0
        %v859 = vmul.f32 %v704, 2.0
        %v860 = vmul.f32 %v705, 2.0
        %v861 = vmul.f32 %v706, 2.0
        %v862 = vmul.f32 %v707, 2.0
        %v863 = vmul.f32 %v708, 2.0
        %v864 = vmul.f32 %v709, 2.0
        %873 = vrot.lane.b32.xlu0 %v857, 127
        %v874 = vpop.permute.xlu0 %873
        %875 = vrot.lane.b32.xlu0 %v858, 127
        %v876 = vpop.permute.xlu0 %875
        %877 = vrot.lane.b32.xlu0 %v859, 127
        %v878 = vpop.permute.xlu0 %877
        %879 = vrot.lane.b32.xlu0 %v860, 127
        %v880 = vpop.permute.xlu0 %879
        %881 = vrot.lane.b32.xlu0 %v861, 127
        %v882 = vpop.permute.xlu0 %881
        %883 = vrot.lane.b32.xlu0 %v862, 127
        %v884 = vpop.permute.xlu0 %883
        %885 = vrot.lane.b32.xlu0 %v863, 127
        %v886 = vpop.permute.xlu0 %885
        %887 = vrot.lane.b32.xlu0 %v864, 127
        %v888 = vpop.permute.xlu0 %887
        %v889 = vsel %vm249, %v874, %v876
        %v890 = vsel %vm249, %v878, %v880
        %v891 = vsel %vm249, %v882, %v884
        %v892 = vsel %vm249, %v886, %v888
        %v897 = vadd.f32 %v712, %v889
        %v898 = vadd.f32 %v713, %v890
        %v899 = vadd.f32 %v714, %v891
        %v900 = vadd.f32 %v715, %v892
        %v901 = vmul.f32 %v702, -1.0
        %v902 = vmul.f32 %v704, -1.0
        %v903 = vmul.f32 %v706, -1.0
        %v904 = vmul.f32 %v708, -1.0
        %v905 = vmul.f32 %v710, -1.0
        %v911 = vrot.slane %v901, 1
        %v912 = vrot.slane %v902, 1
        %v913 = vsel %vm267, %v911, %v912
        %v914 = vrot.slane %v903, 1
        %v915 = vsel %vm267, %v912, %v914
        %v916 = vrot.slane %v904, 1
        %v917 = vsel %vm267, %v914, %v916
        %v918 = vrot.slane %v905, 1
        %v919 = vsel %vm267, %v916, %v918
        %v924 = vadd.f32 %v897, %v913
        %v925 = vadd.f32 %v898, %v915
        %v926 = vadd.f32 %v899, %v917
        %v927 = vadd.f32 %v900, %v919
        %v928 = vadd.f32 %v924, %v832
        %v929 = vadd.f32 %v925, %v833
        %v930 = vadd.f32 %v926, %v834
        %v931 = vadd.f32 %v927, %v835
        %v932 = vmul.f32 %v928, %v436
        %v933 = vmul.f32 %v929, %v436
        %v934 = vmul.f32 %v930, %v436
        %v935 = vmul.f32 %v931, %v436
        %v936 = vadd.f32 %v932, %v441
        %v937 = vadd.f32 %v933, %v441
        %v938 = vadd.f32 %v934, %v441
        %v939 = vadd.f32 %v935, %v441
        %s940 = sadd.s32 64, 128
        %s941 = scalar_lea.vmem %s190, %s940 [#allocation7]
        %942 = vst [vmem:[%s941] sm:$0xff] %v936
        %943 = vst [vmem:[%s941 + $0x8] sm:$0xff] %v937
        %944 = vst [vmem:[%s941 + $0x10] sm:$0xff] %v938
        %945 = vst [vmem:[%s941 + $0x18] sm:$0xff] %v939
        %s946 = smul.u32 12, 2
        %s947 = smul.addr %s946, 8
        %s948 = scalar_lea.vmem %s195, %s947
        %v949 = vld [vmem:[%s948] sm:$0xff]
        %v950 = vld [vmem:[%s948 + $0x8] sm:$0xff]
        %v951 = vld [vmem:[%s948 + $0x10] sm:$0xff]
        %v952 = vld [vmem:[%s948 + $0x18] sm:$0xff]
        %v953 = vld [vmem:[%s948 + $0x20] sm:$0xff]
        %v954 = vld [vmem:[%s948 + $0x28] sm:$0xff]
        %v955 = vld [vmem:[%s948 + $0x30] sm:$0xff]
        %v956 = vld [vmem:[%s948 + $0x38] sm:$0xff]
        %v957 = vld [vmem:[%s948 + $0x40] sm:$0x1]
        %v958 = vld [vmem:[%s948 + $0x48] sm:$0x1]
        %v959 = vmul.f32 %v949, 0.1
        %v960 = vmul.f32 %v951, 0.1
        %v961 = vmul.f32 %v953, 0.1
        %v962 = vmul.f32 %v955, 0.1
        %v963 = vmul.f32 %v949, -2.0
        %v964 = vmul.f32 %v950, -2.0
        %v965 = vmul.f32 %v951, -2.0
        %v966 = vmul.f32 %v952, -2.0
        %v967 = vmul.f32 %v953, -2.0
        %v968 = vmul.f32 %v954, -2.0
        %v969 = vmul.f32 %v955, -2.0
        %v970 = vmul.f32 %v956, -2.0
        %979 = vrot.lane.b32.xlu0 %v963, 127
        %v980 = vpop.permute.xlu0 %979
        %981 = vrot.lane.b32.xlu0 %v964, 127
        %v982 = vpop.permute.xlu0 %981
        %983 = vrot.lane.b32.xlu0 %v965, 127
        %v984 = vpop.permute.xlu0 %983
        %985 = vrot.lane.b32.xlu0 %v966, 127
        %v986 = vpop.permute.xlu0 %985
        %987 = vrot.lane.b32.xlu0 %v967, 127
        %v988 = vpop.permute.xlu0 %987
        %989 = vrot.lane.b32.xlu0 %v968, 127
        %v990 = vpop.permute.xlu0 %989
        %991 = vrot.lane.b32.xlu0 %v969, 127
        %v992 = vpop.permute.xlu0 %991
        %993 = vrot.lane.b32.xlu0 %v970, 127
        %v994 = vpop.permute.xlu0 %993
        %v995 = vsel %vm249, %v980, %v982
        %v996 = vsel %vm249, %v984, %v986
        %v997 = vsel %vm249, %v988, %v990
        %v998 = vsel %vm249, %v992, %v994
        %v1003 = vadd.f32 %v959, %v995
        %v1004 = vadd.f32 %v960, %v996
        %v1005 = vadd.f32 %v961, %v997
        %v1006 = vadd.f32 %v962, %v998
        %v1012 = vrot.slane %v949, 1
        %v1013 = vrot.slane %v951, 1
        %v1014 = vsel %vm267, %v1012, %v1013
        %v1015 = vrot.slane %v953, 1
        %v1016 = vsel %vm267, %v1013, %v1015
        %v1017 = vrot.slane %v955, 1
        %v1018 = vsel %vm267, %v1015, %v1017
        %v1019 = vrot.slane %v957, 1
        %v1020 = vsel %vm267, %v1017, %v1019
        %v1025 = vadd.f32 %v1003, %v1014
        %v1026 = vadd.f32 %v1004, %v1016
        %v1027 = vadd.f32 %v1005, %v1018
        %v1028 = vadd.f32 %v1006, %v1020
        %v1029 = vmul.f32 %v950, 0.1
        %v1030 = vmul.f32 %v952, 0.1
        %v1031 = vmul.f32 %v954, 0.1
        %v1032 = vmul.f32 %v956, 0.1
        %v1033 = vmul.f32 %v957, 0.1
        %v1034 = vmul.f32 %v958, 0.1
        %v1045 = vrot.slane %v959, 1
        %v1046 = vrot.slane %v960, 1
        %v1047 = vsel %vm267, %v1045, %v1046
        %v1048 = vrot.slane %v1029, 1
        %v1049 = vrot.slane %v1030, 1
        %v1050 = vsel %vm267, %v1048, %v1049
        %v1051 = vrot.slane %v961, 1
        %v1052 = vsel %vm267, %v1046, %v1051
        %v1053 = vrot.slane %v1031, 1
        %v1054 = vsel %vm267, %v1049, %v1053
        %v1055 = vrot.slane %v962, 1
        %v1056 = vsel %vm267, %v1051, %v1055
        %v1057 = vrot.slane %v1032, 1
        %v1058 = vsel %vm267, %v1053, %v1057
        %v1059 = vrot.slane %v1033, 1
        %v1060 = vsel %vm267, %v1055, %v1059
        %v1061 = vrot.slane %v1034, 1
        %v1062 = vsel %vm267, %v1057, %v1061
        %1063 = vrot.lane.b32.xlu0 %v1047, 127
        %v1064 = vpop.permute.xlu0 %1063
        %1065 = vrot.lane.b32.xlu0 %v1050, 127
        %v1066 = vpop.permute.xlu0 %1065
        %1067 = vrot.lane.b32.xlu0 %v1052, 127
        %v1068 = vpop.permute.xlu0 %1067
        %1069 = vrot.lane.b32.xlu0 %v1054, 127
        %v1070 = vpop.permute.xlu0 %1069
        %1071 = vrot.lane.b32.xlu0 %v1056, 127
        %v1072 = vpop.permute.xlu0 %1071
        %1073 = vrot.lane.b32.xlu0 %v1058, 127
        %v1074 = vpop.permute.xlu0 %1073
        %1075 = vrot.lane.b32.xlu0 %v1060, 127
        %v1076 = vpop.permute.xlu0 %1075
        %1077 = vrot.lane.b32.xlu0 %v1062, 127
        %v1078 = vpop.permute.xlu0 %1077
        %v1079 = vsel %vm249, %v1064, %v1066
        %v1080 = vsel %vm249, %v1068, %v1070
        %v1081 = vsel %vm249, %v1072, %v1074
        %v1082 = vsel %vm249, %v1076, %v1078
        %v1087 = vadd.f32 %v1025, %v1079
        %v1088 = vadd.f32 %v1026, %v1080
        %v1089 = vadd.f32 %v1027, %v1081
        %v1090 = vadd.f32 %v1028, %v1082
        %v1091 = vmul.f32 %v1087, %v347
        %v1092 = vmul.f32 %v1088, %v347
        %v1093 = vmul.f32 %v1089, %v347
        %v1094 = vmul.f32 %v1090, %v347
        %v1095 = vadd.f32 %v1091, %v352
        %v1096 = vadd.f32 %v1092, %v352
        %v1097 = vadd.f32 %v1093, %v352
        %v1098 = vadd.f32 %v1094, %v352
        %s1099 = scalar_lea.vmem %s190, 96 [#allocation7]
        %1100 = vst [vmem:[%s1099] sm:$0xff] %v1095
        %1101 = vst [vmem:[%s1099 + $0x8] sm:$0xff] %v1096
        %1102 = vst [vmem:[%s1099 + $0x10] sm:$0xff] %v1097
        %1103 = vst [vmem:[%s1099 + $0x18] sm:$0xff] %v1098
        %v1104 = vmul.f32 %v949, 2.0
        %v1105 = vmul.f32 %v950, 2.0
        %v1106 = vmul.f32 %v951, 2.0
        %v1107 = vmul.f32 %v952, 2.0
        %v1108 = vmul.f32 %v953, 2.0
        %v1109 = vmul.f32 %v954, 2.0
        %v1110 = vmul.f32 %v955, 2.0
        %v1111 = vmul.f32 %v956, 2.0
        %1120 = vrot.lane.b32.xlu0 %v1104, 127
        %v1121 = vpop.permute.xlu0 %1120
        %1122 = vrot.lane.b32.xlu0 %v1105, 127
        %v1123 = vpop.permute.xlu0 %1122
        %1124 = vrot.lane.b32.xlu0 %v1106, 127
        %v1125 = vpop.permute.xlu0 %1124
        %1126 = vrot.lane.b32.xlu0 %v1107, 127
        %v1127 = vpop.permute.xlu0 %1126
        %1128 = vrot.lane.b32.xlu0 %v1108, 127
        %v1129 = vpop.permute.xlu0 %1128
        %1130 = vrot.lane.b32.xlu0 %v1109, 127
        %v1131 = vpop.permute.xlu0 %1130
        %1132 = vrot.lane.b32.xlu0 %v1110, 127
        %v1133 = vpop.permute.xlu0 %1132
        %1134 = vrot.lane.b32.xlu0 %v1111, 127
        %v1135 = vpop.permute.xlu0 %1134
        %v1136 = vsel %vm249, %v1121, %v1123
        %v1137 = vsel %vm249, %v1125, %v1127
        %v1138 = vsel %vm249, %v1129, %v1131
        %v1139 = vsel %vm249, %v1133, %v1135
        %v1144 = vadd.f32 %v959, %v1136
        %v1145 = vadd.f32 %v960, %v1137
        %v1146 = vadd.f32 %v961, %v1138
        %v1147 = vadd.f32 %v962, %v1139
        %v1148 = vmul.f32 %v949, -1.0
        %v1149 = vmul.f32 %v951, -1.0
        %v1150 = vmul.f32 %v953, -1.0
        %v1151 = vmul.f32 %v955, -1.0
        %v1152 = vmul.f32 %v957, -1.0
        %v1158 = vrot.slane %v1148, 1
        %v1159 = vrot.slane %v1149, 1
        %v1160 = vsel %vm267, %v1158, %v1159
        %v1161 = vrot.slane %v1150, 1
        %v1162 = vsel %vm267, %v1159, %v1161
        %v1163 = vrot.slane %v1151, 1
        %v1164 = vsel %vm267, %v1161, %v1163
        %v1165 = vrot.slane %v1152, 1
        %v1166 = vsel %vm267, %v1163, %v1165
        %v1171 = vadd.f32 %v1144, %v1160
        %v1172 = vadd.f32 %v1145, %v1162
        %v1173 = vadd.f32 %v1146, %v1164
        %v1174 = vadd.f32 %v1147, %v1166
        %v1175 = vadd.f32 %v1171, %v1079
        %v1176 = vadd.f32 %v1172, %v1080
        %v1177 = vadd.f32 %v1173, %v1081
        %v1178 = vadd.f32 %v1174, %v1082
        %v1179 = vmul.f32 %v1175, %v436
        %v1180 = vmul.f32 %v1176, %v436
        %v1181 = vmul.f32 %v1177, %v436
        %v1182 = vmul.f32 %v1178, %v436
        %v1183 = vadd.f32 %v1179, %v441
        %v1184 = vadd.f32 %v1180, %v441
        %v1185 = vadd.f32 %v1181, %v441
        %v1186 = vadd.f32 %v1182, %v441
        %s1187 = sadd.s32 96, 128
        %s1188 = scalar_lea.vmem %s190, %s1187 [#allocation7]
        %1189 = vst [vmem:[%s1188] sm:$0xff] %v1183
        %1190 = vst [vmem:[%s1188 + $0x8] sm:$0xff] %v1184
        %1191 = vst [vmem:[%s1188 + $0x10] sm:$0xff] %v1185
        %1192 = vst [vmem:[%s1188 + $0x18] sm:$0xff] %v1186
        %s1193 = sand.u32 %s95, 1
        %s1194 = scalar_lea.sflag [#allocation3], %s1193
        %s1195 = sand.u32 %s95, 1
        %s1196 = smul.addr %s1195, 256
        %s1197 = scalar_lea.vmem [#allocation7], %s1196
        // Predicated region
        $region41: #{custom_conv_bn_forward.3} parent=31 // pred_check
          %p1198 = pneg %p105
        $region42: #{custom_conv_bn_forward.3} parent=31 // pred_check_branch
          %1200 = sbr.rel (%p1198) target = $region44
        $region43: #{custom_conv_bn_forward.3} parent=31 // pred_region
          %s1202 = ssub.s32 4096, 4096
          %1203 = vsyncadd %s1194, %s1202
          %s1204 = smul.addr %s19, 32
          %s1205 = smul.addr %s1204, 128
          %s1206 = scalar_lea.hbm %s3, %s1205
          %s1207 = sshll.u32 %s1197, 4
          %s1208 = int_to_ptr.vmem [resolvable:$true] %s1207
          %1213 = dma.vmem_to_hbm [thread:$0]  %s1208, 4096, %s1206, %s1194, 128, 128, 8
        $region44: #{custom_conv_bn_forward.3} parent=31 // pred_fallthru
          _
      $region32: #{custom_conv_bn_forward.3} parent=5 // pred_fallthru
        _
      %p1214 = scmp.le.s32.totalorder 2, %s14
      // Predicated region
      $region45: #{custom_conv_bn_forward.3} parent=5 // pred_check
        %p1215 = pneg %p1214
      $region46: #{custom_conv_bn_forward.3} parent=5 // pred_check_branch
        %1217 = sbr.rel (%p1215) target = $region48
      $region47: #{custom_conv_bn_forward.3} parent=5 // pred_region
        %s1218 = ssub.s32 %s14, 2
        // Predicated region
        $region49: #{custom_conv_bn_forward.3} parent=47 // pred_check
          %p1219 = pneg %p111
        $region50: #{custom_conv_bn_forward.3} parent=47 // pred_check_branch
          %1221 = sbr.rel (%p1219) target = $region52
        $region51: #{custom_conv_bn_forward.3} parent=47 // pred_region
          %s1222 = sand.u32 %s96, 1
          %s1223 = scalar_lea.sflag [#allocation3], %s1222
          %s1224 = sand.u32 %s96, 1
          %s1225 = smul.addr %s1224, 256
          %s1226 = scalar_lea.vmem [#allocation7], %s1225
          %1227 = dma.done %s1223, 4096
        $region52: #{custom_conv_bn_forward.3} parent=47 // pred_fallthru
          _
      $region48: #{custom_conv_bn_forward.3} parent=5 // pred_fallthru
        _
    $region6: #{custom_conv_bn_forward.3} parent=1 // loop_footer
      %s18 = sadd.s32 1, %s14
    $region7: #{custom_conv_bn_forward.3} parent=1 // loop_footer_branch
      %13 = sbr.rel target = $region3
    $region8: #{custom_conv_bn_forward.3} parent=1 // loop_exit
      _
    %1228 = vsyncpa [#allocation3], 1
    %s1229 = scalar_lea.sflag [#allocation3], 1
    %1230 = vsyncpa %s1229, 1
    %1231 = vsyncpa [#allocation4], 1
    %s1232 = scalar_lea.sflag [#allocation4], 1
    %1233 = vsyncpa %s1232, 1
    %1234 = vsyncpa [#allocation6], 1

</llo_original>
